<compile_context>
chip_gen: v6e
topology: v6e:2x2x1
jax: 0.10.0
libtpu: 0.0.40
codegen_flags: <defaults>
</compile_context>

<pallas_src>
import functools

import jax
import jax.numpy as jnp
from jax.experimental import pallas as pl
from jax.experimental.pallas import tpu as pltpu


# ----------------------- Pallas kernels -----------------------

def _conv_relu_pool_kernel(p_ref, w_ref, b_ref, o_ref, *, quad_rows):
    """Fused conv (as im2col matmul) + bias + ReLU + 2x2 max-pool epilogue.

    p_ref: (4*Q, K*K*Cin) bf16 patches for one image; rows ordered
           (pool_quadrant pi*2+pj, out_h, out_w) so each quadrant is a contiguous,
           sublane-aligned block of Q rows.
    w_ref: (K*K*Cin, Cout) bf16, b_ref: (1, Cout) f32.
    o_ref: (Q, Cout) bf16 pooled activation, rows in (out_h, out_w) row-major order
           with channels last (i.e. HWC-flattened), ready for the next stage.
    """
    y = jnp.dot(p_ref[...], w_ref[...], preferred_element_type=jnp.float32)
    y = jnp.maximum(y + b_ref[...], 0.0)
    q = quad_rows
    pooled = jnp.maximum(jnp.maximum(y[0:q], y[q:2 * q]),
                         jnp.maximum(y[2 * q:3 * q], y[3 * q:4 * q]))
    o_ref[...] = pooled.astype(o_ref.dtype)


def conv_relu_pool(patches, w_col, b, cout):
    """patches: (n, 4*Q, F) bf16 -> (n, Q, cout) bf16 pooled activation."""
    n, rows, feat = patches.shape
    q = rows // 4
    kernel = functools.partial(_conv_relu_pool_kernel, quad_rows=q)
    return pl.pallas_call(
        kernel,
        out_shape=jax.ShapeDtypeStruct((n, q, cout), jnp.bfloat16),
        grid=(n,),                                     # one image per step; >=2 steps -> v7x megacore
        in_specs=[
            pl.BlockSpec((None, rows, feat), lambda i: (i, 0, 0)),
            pl.BlockSpec((feat, cout), lambda i: (0, 0)),   # weights resident / invariant
            pl.BlockSpec((1, cout), lambda i: (0, 0)),
        ],
        out_specs=pl.BlockSpec((None, q, cout), lambda i: (i, 0, 0)),
        compiler_params=pltpu.CompilerParams(dimension_semantics=("parallel",)),
    )(patches, w_col, b)


def _fc_logsoftmax_kernel(x_ref, w_ref, b_ref, o_ref):
    logits = jnp.dot(x_ref[...], w_ref[...], preferred_element_type=jnp.float32)
    logits = logits + b_ref[...]
    m = jnp.max(logits, axis=-1, keepdims=True)
    s = logits - m
    lse = jnp.log(jnp.sum(jnp.exp(s), axis=-1, keepdims=True))
    o_ref[...] = (s - lse).astype(o_ref.dtype)


def fc_log_softmax(x, w, b):
    """x:(M,K) bf16, w:(K,Nout) bf16, b:(1,Nout) f32 -> log_softmax(x@w+b) f32."""
    m, k = x.shape
    _, nout = w.shape
    tm = m if m <= 256 else 256                        # keep blocks VMEM-safe for large batch
    return pl.pallas_call(
        _fc_logsoftmax_kernel,
        out_shape=jax.ShapeDtypeStruct((m, nout), jnp.float32),
        grid=(pl.cdiv(m, tm),),
        in_specs=[
            pl.BlockSpec((tm, k), lambda i: (i, 0)),
            pl.BlockSpec((k, nout), lambda i: (0, 0)),
            pl.BlockSpec((1, nout), lambda i: (0, 0)),
        ],
        out_specs=pl.BlockSpec((tm, nout), lambda i: (i, 0)),
        compiler_params=pltpu.CompilerParams(dimension_semantics=("parallel",)),
    )(x, w, b)


# ----------------------- JAX glue -----------------------

def _im2col_pool_quadrants(x_nhwc, k):
    """im2col for a valid k x k conv, with rows grouped by 2x2-pool quadrant.

    Returns (patches, oh, ow) where patches is (n, 4*oh*ow, k*k*c).
    Row ((pi*2+pj)*oh + a)*ow + b, feature (ki*k+kj)*c + ci equals
    x[n, 2a+pi+ki, 2b+pj+kj, ci]  -- i.e. conv output pixel (2a+pi, 2b+pj).
    """
    n, h, w, c = x_nhwc.shape
    ho, wo = h - k + 1, w - k + 1
    oh, ow = ho // 2, wo // 2
    taps = [x_nhwc[:, i:i + ho, j:j + wo, :] for i in range(k) for j in range(k)]
    p = jnp.stack(taps, axis=3)                        # (n, ho, wo, k*k, c)
    p = p.reshape(n, oh, 2, ow, 2, k * k * c)
    p = jnp.transpose(p, (0, 2, 4, 1, 3, 5))           # (n, pi, pj, oh, ow, F)
    return p.reshape(n, 4 * oh * ow, k * k * c), oh, ow


def conv_weight_to_col(w_oihw):
    # PyTorch conv weight (O, I, KH, KW) -> (KH*KW*I, O), matching im2col feature order.
    o, i, kh, kw = w_oihw.shape
    return jnp.transpose(w_oihw, (2, 3, 1, 0)).reshape(kh * kw * i, o)


def init_params(key):
    """PyTorch-layout parameters (same init scheme as nn.Conv2d / nn.Linear)."""
    k1, k2, k3, k4, k5, k6 = jax.random.split(key, 6)

    def u(k, shape, fan_in):
        bound = 1.0 / jnp.sqrt(float(fan_in))
        return jax.random.uniform(k, shape, jnp.float32, -bound, bound)

    return {
        "conv1_w": u(k1, (32, 1, 5, 5), 1 * 5 * 5),
        "conv1_b": u(k2, (32,), 1 * 5 * 5),
        "conv2_w": u(k3, (64, 32, 5, 5), 32 * 5 * 5),
        "conv2_b": u(k4, (64,), 32 * 5 * 5),
        "fc1_w": u(k5, (10, 4 * 4 * 64), 4 * 4 * 64),
        "fc1_b": u(k6, (10,), 4 * 4 * 64),
    }


def prepare_params(params):
    """One-time (outside jit) layout folding: im2col weights, CHW->HWC fc permutation,
    bf16 MXU operands, f32 biases."""
    # fc1_w columns are indexed (c, h, w) in PyTorch's NCHW flatten; our activations are
    # HWC-flattened, so permute once and pre-transpose to (1024, 10).
    wfc = params["fc1_w"].reshape(10, 64, 4, 4)                 # (out, c, h, w)
    wfc = jnp.transpose(wfc, (2, 3, 1, 0)).reshape(4 * 4 * 64, 10)
    return {
        "w1": conv_weight_to_col(params["conv1_w"]).astype(jnp.bfloat16),   # (25, 32)
        "b1": params["conv1_b"].reshape(1, 32).astype(jnp.float32),
        "w2": conv_weight_to_col(params["conv2_w"]).astype(jnp.bfloat16),   # (800, 64)
        "b2": params["conv2_b"].reshape(1, 64).astype(jnp.float32),
        "wfc": wfc.astype(jnp.bfloat16),                                    # (1024, 10)
        "bfc": params["fc1_b"].reshape(1, 10).astype(jnp.float32),
    }


@jax.jit
def forward(prepared, x_nchw):
    n = x_nchw.shape[0]
    x = jnp.transpose(x_nchw, (0, 2, 3, 1)).astype(jnp.bfloat16)   # NCHW -> NHWC, bf16

    # conv1 + relu + maxpool2 (fused kernel)
    p1, oh1, ow1 = _im2col_pool_quadrants(x, 5)                    # (n, 576, 25)
    a1 = conv_relu_pool(p1, prepared["w1"], prepared["b1"], 32)    # (n, 144, 32)
    a1 = a1.reshape(n, oh1, ow1, 32)                               # (n, 12, 12, 32) NHWC

    # conv2 + relu + maxpool2 (fused kernel)
    p2, _, _ = _im2col_pool_quadrants(a1, 5)                       # (n, 64, 800)
    a2 = conv_relu_pool(p2, prepared["w2"], prepared["b2"], 64)    # (n, 16, 64)

    # HWC flatten (matches the pre-permuted fc weight), then fc + log_softmax
    flat = a2.reshape(n, 4 * 4 * 64)                               # (n, 1024)
    return fc_log_softmax(flat, prepared["wfc"], prepared["bfc"])  # (n, 10) f32


if __name__ == "__main__":
    key = jax.random.PRNGKey(0)
    kx, kp = jax.random.split(key)
    # Spatial size 28x28 is required by fc1 = Linear(4*4*64, 10); batch kept small.
    x = jax.random.normal(kx, (2, 1, 28, 28), dtype=jnp.float32)
    params = init_params(kp)
    prepared = prepare_params(params)       # one-time layout/dtype folding, outside jit

    out = jax.block_until_ready(forward(prepared, x))
    assert out.shape == (2, 10)
    # log_softmax rows must exponentiate-sum to ~1 (computed in f32 inside the kernel)
    assert bool(jnp.all(jnp.abs(jnp.sum(jnp.exp(out), axis=1) - 1.0) < 1e-4))
    print("KERNEL_OK")
</pallas_src>

<mosaic_0001>
module attributes {stable_mosaic.version = 11 : i64} {
  func.func @_conv_relu_pool_kernel(%arg0: i32, %arg1: memref<1x576x25xbf16, #tpu.memory_space<vmem>>, %arg2: memref<25x32xbf16, #tpu.memory_space<vmem>>, %arg3: memref<1x32xf32, #tpu.memory_space<vmem>>, %arg4: memref<1x144x32xbf16, #tpu.memory_space<vmem>>) attributes {dimension_semantics = [#tpu.dimension_semantics<parallel>], iteration_bounds = array<i64: 2>, scalar_prefetch = 0 : i64, scratch_operands = 0 : i64, tpu.core_type = #tpu.core_type<tc>, window_params = [{transform_indices = @transform_0, window_bounds = array<i64: 1, 576, 25>}, {pipeline_mode = #tpu.pipeline_mode<synchronous>, transform_indices = @transform_1, window_bounds = array<i64: 25, 32>}, {pipeline_mode = #tpu.pipeline_mode<synchronous>, transform_indices = @transform_2, window_bounds = array<i64: 1, 32>}, {transform_indices = @transform_3, window_bounds = array<i64: 1, 144, 32>}]} {
    %c0 = arith.constant 0 : index
    %c0_0 = arith.constant 0 : index
    %c0_1 = arith.constant 0 : index
    %0 = vector.load %arg1[%c0, %c0_0, %c0_1] : memref<1x576x25xbf16, #tpu.memory_space<vmem>>, vector<1x576x25xbf16>
    %1 = vector.shape_cast %0 : vector<1x576x25xbf16> to vector<576x25xbf16>
    %c0_2 = arith.constant 0 : index
    %c0_3 = arith.constant 0 : index
    %2 = vector.load %arg2[%c0_2, %c0_3] : memref<25x32xbf16, #tpu.memory_space<vmem>>, vector<25x32xbf16>
    %cst = arith.constant dense<0.000000e+00> : vector<576x32xf32>
    %3 = tpu.matmul %1, %2, %cst {dimension_numbers = #tpu.dot_dimension_numbers<[1], [0], [0], [1], [0, 0, 1, 1], [], []>} : vector<576x25xbf16>, vector<25x32xbf16>, vector<576x32xf32> -> vector<576x32xf32>
    %c0_4 = arith.constant 0 : index
    %c0_5 = arith.constant 0 : index
    %4 = vector.load %arg3[%c0_4, %c0_5] : memref<1x32xf32, #tpu.memory_space<vmem>>, vector<1x32xf32>
    %5 = vector.broadcast %4 : vector<1x32xf32> to vector<576x32xf32>
    %6 = arith.addf %3, %5 : vector<576x32xf32>
    %cst_6 = arith.constant 0.000000e+00 : f32
    %7 = vector.broadcast %cst_6 : f32 to vector<576x32xf32>
    %8 = arith.maximumf %6, %7 : vector<576x32xf32>
    %9 = vector.extract_strided_slice %8 {offsets = [0, 0], sizes = [144, 32], strides = [1, 1]} : vector<576x32xf32> to vector<144x32xf32>
    %10 = vector.extract_strided_slice %8 {offsets = [144, 0], sizes = [144, 32], strides = [1, 1]} : vector<576x32xf32> to vector<144x32xf32>
    %11 = arith.maximumf %9, %10 : vector<144x32xf32>
    %12 = vector.extract_strided_slice %8 {offsets = [288, 0], sizes = [144, 32], strides = [1, 1]} : vector<576x32xf32> to vector<144x32xf32>
    %13 = vector.extract_strided_slice %8 {offsets = [432, 0], sizes = [144, 32], strides = [1, 1]} : vector<576x32xf32> to vector<144x32xf32>
    %14 = arith.maximumf %12, %13 : vector<144x32xf32>
    %15 = arith.maximumf %11, %14 : vector<144x32xf32>
    %16 = arith.truncf %15 : vector<144x32xf32> to vector<144x32xbf16>
    %c0_7 = arith.constant 0 : index
    %c0_8 = arith.constant 0 : index
    %c0_9 = arith.constant 0 : index
    %17 = vector.load %arg4[%c0_7, %c0_8, %c0_9] : memref<1x144x32xbf16, #tpu.memory_space<vmem>>, vector<1x144x32xbf16>
    %18 = vector.shape_cast %17 : vector<1x144x32xbf16> to vector<144x32xbf16>
    %19 = vector.shape_cast %16 : vector<144x32xbf16> to vector<1x144x32xbf16>
    tpu.vector_store %arg4[%c0_7, %c0_8, %c0_9], %19 {strides = array<i32>} : memref<1x144x32xbf16, #tpu.memory_space<vmem>>, vector<1x144x32xbf16>,
    return
  }
  func.func @transform_0(%arg0: i32) -> (i32, i32, i32) {
    %c0_i32 = arith.constant 0 : i32
    %c0_i32_0 = arith.constant 0 : i32
    %c0_i32_1 = arith.constant 0 : i32
    return %arg0, %c0_i32, %c0_i32_0 : i32, i32, i32
  }
  func.func @transform_1(%arg0: i32) -> (i32, i32) {
    %c0_i32 = arith.constant 0 : i32
    %c0_i32_0 = arith.constant 0 : i32
    %c0_i32_1 = arith.constant 0 : i32
    return %c0_i32, %c0_i32_0 : i32, i32
  }
  func.func @transform_2(%arg0: i32) -> (i32, i32) {
    %c0_i32 = arith.constant 0 : i32
    %c0_i32_0 = arith.constant 0 : i32
    %c0_i32_1 = arith.constant 0 : i32
    return %c0_i32, %c0_i32_0 : i32, i32
  }
  func.func @transform_3(%arg0: i32) -> (i32, i32, i32) {
    %c0_i32 = arith.constant 0 : i32
    %c0_i32_0 = arith.constant 0 : i32
    %c0_i32_1 = arith.constant 0 : i32
    return %arg0, %c0_i32, %c0_i32_0 : i32, i32, i32
  }
}

module attributes {stable_mosaic.version = 11 : i64} {
  func.func @_conv_relu_pool_kernel(%arg0: i32, %arg1: memref<1x64x800xbf16, #tpu.memory_space<vmem>>, %arg2: memref<800x64xbf16, #tpu.memory_space<vmem>>, %arg3: memref<1x64xf32, #tpu.memory_space<vmem>>, %arg4: memref<1x16x64xbf16, #tpu.memory_space<vmem>>) attributes {dimension_semantics = [#tpu.dimension_semantics<parallel>], iteration_bounds = array<i64: 2>, scalar_prefetch = 0 : i64, scratch_operands = 0 : i64, tpu.core_type = #tpu.core_type<tc>, window_params = [{transform_indices = @transform_0, window_bounds = array<i64: 1, 64, 800>}, {pipeline_mode = #tpu.pipeline_mode<synchronous>, transform_indices = @transform_1, window_bounds = array<i64: 800, 64>}, {pipeline_mode = #tpu.pipeline_mode<synchronous>, transform_indices = @transform_2, window_bounds = array<i64: 1, 64>}, {transform_indices = @transform_3, window_bounds = array<i64: 1, 16, 64>}]} {
    %c0 = arith.constant 0 : index
    %c0_0 = arith.constant 0 : index
    %c0_1 = arith.constant 0 : index
    %0 = vector.load %arg1[%c0, %c0_0, %c0_1] : memref<1x64x800xbf16, #tpu.memory_space<vmem>>, vector<1x64x800xbf16>
    %1 = vector.shape_cast %0 : vector<1x64x800xbf16> to vector<64x800xbf16>
    %c0_2 = arith.constant 0 : index
    %c0_3 = arith.constant 0 : index
    %2 = vector.load %arg2[%c0_2, %c0_3] : memref<800x64xbf16, #tpu.memory_space<vmem>>, vector<800x64xbf16>
    %cst = arith.constant dense<0.000000e+00> : vector<64x64xf32>
    %3 = tpu.matmul %1, %2, %cst {dimension_numbers = #tpu.dot_dimension_numbers<[1], [0], [0], [1], [0, 0, 1, 1], [], []>} : vector<64x800xbf16>, vector<800x64xbf16>, vector<64x64xf32> -> vector<64x64xf32>
    %c0_4 = arith.constant 0 : index
    %c0_5 = arith.constant 0 : index
    %4 = vector.load %arg3[%c0_4, %c0_5] : memref<1x64xf32, #tpu.memory_space<vmem>>, vector<1x64xf32>
    %5 = vector.broadcast %4 : vector<1x64xf32> to vector<64x64xf32>
    %6 = arith.addf %3, %5 : vector<64x64xf32>
    %cst_6 = arith.constant 0.000000e+00 : f32
    %7 = vector.broadcast %cst_6 : f32 to vector<64x64xf32>
    %8 = arith.maximumf %6, %7 : vector<64x64xf32>
    %9 = vector.extract_strided_slice %8 {offsets = [0, 0], sizes = [16, 64], strides = [1, 1]} : vector<64x64xf32> to vector<16x64xf32>
    %10 = vector.extract_strided_slice %8 {offsets = [16, 0], sizes = [16, 64], strides = [1, 1]} : vector<64x64xf32> to vector<16x64xf32>
    %11 = arith.maximumf %9, %10 : vector<16x64xf32>
    %12 = vector.extract_strided_slice %8 {offsets = [32, 0], sizes = [16, 64], strides = [1, 1]} : vector<64x64xf32> to vector<16x64xf32>
    %13 = vector.extract_strided_slice %8 {offsets = [48, 0], sizes = [16, 64], strides = [1, 1]} : vector<64x64xf32> to vector<16x64xf32>
    %14 = arith.maximumf %12, %13 : vector<16x64xf32>
    %15 = arith.maximumf %11, %14 : vector<16x64xf32>
    %16 = arith.truncf %15 : vector<16x64xf32> to vector<16x64xbf16>
    %c0_7 = arith.constant 0 : index
    %c0_8 = arith.constant 0 : index
    %c0_9 = arith.constant 0 : index
    %17 = vector.load %arg4[%c0_7, %c0_8, %c0_9] : memref<1x16x64xbf16, #tpu.memory_space<vmem>>, vector<1x16x64xbf16>
    %18 = vector.shape_cast %17 : vector<1x16x64xbf16> to vector<16x64xbf16>
    %19 = vector.shape_cast %16 : vector<16x64xbf16> to vector<1x16x64xbf16>
    tpu.vector_store %arg4[%c0_7, %c0_8, %c0_9], %19 {strides = array<i32>} : memref<1x16x64xbf16, #tpu.memory_space<vmem>>, vector<1x16x64xbf16>,
    return
  }
  func.func @transform_0(%arg0: i32) -> (i32, i32, i32) {
    %c0_i32 = arith.constant 0 : i32
    %c0_i32_0 = arith.constant 0 : i32
    %c0_i32_1 = arith.constant 0 : i32
    return %arg0, %c0_i32, %c0_i32_0 : i32, i32, i32
  }
  func.func @transform_1(%arg0: i32) -> (i32, i32) {
    %c0_i32 = arith.constant 0 : i32
    %c0_i32_0 = arith.constant 0 : i32
    %c0_i32_1 = arith.constant 0 : i32
    return %c0_i32, %c0_i32_0 : i32, i32
  }
  func.func @transform_2(%arg0: i32) -> (i32, i32) {
    %c0_i32 = arith.constant 0 : i32
    %c0_i32_0 = arith.constant 0 : i32
    %c0_i32_1 = arith.constant 0 : i32
    return %c0_i32, %c0_i32_0 : i32, i32
  }
  func.func @transform_3(%arg0: i32) -> (i32, i32, i32) {
    %c0_i32 = arith.constant 0 : i32
    %c0_i32_0 = arith.constant 0 : i32
    %c0_i32_1 = arith.constant 0 : i32
    return %arg0, %c0_i32, %c0_i32_0 : i32, i32, i32
  }
}

module attributes {stable_mosaic.version = 11 : i64} {
  func.func @_fc_logsoftmax_kernel(%arg0: i32, %arg1: memref<2x1024xbf16, #tpu.memory_space<vmem>>, %arg2: memref<1024x10xbf16, #tpu.memory_space<vmem>>, %arg3: memref<1x10xf32, #tpu.memory_space<vmem>>, %arg4: memref<2x10xf32, #tpu.memory_space<vmem>>) attributes {dimension_semantics = [#tpu.dimension_semantics<parallel>], iteration_bounds = array<i64: 1>, scalar_prefetch = 0 : i64, scratch_operands = 0 : i64, tpu.core_type = #tpu.core_type<tc>, window_params = [{transform_indices = @transform_0, window_bounds = array<i64: 2, 1024>}, {pipeline_mode = #tpu.pipeline_mode<synchronous>, transform_indices = @transform_1, window_bounds = array<i64: 1024, 10>}, {pipeline_mode = #tpu.pipeline_mode<synchronous>, transform_indices = @transform_2, window_bounds = array<i64: 1, 10>}, {transform_indices = @transform_3, window_bounds = array<i64: 2, 10>}]} {
    %c0 = arith.constant 0 : index
    %c0_0 = arith.constant 0 : index
    %0 = vector.load %arg1[%c0, %c0_0] : memref<2x1024xbf16, #tpu.memory_space<vmem>>, vector<2x1024xbf16>
    %c0_1 = arith.constant 0 : index
    %c0_2 = arith.constant 0 : index
    %1 = vector.load %arg2[%c0_1, %c0_2] : memref<1024x10xbf16, #tpu.memory_space<vmem>>, vector<1024x10xbf16>
    %cst = arith.constant dense<0.000000e+00> : vector<2x10xf32>
    %2 = tpu.matmul %0, %1, %cst {dimension_numbers = #tpu.dot_dimension_numbers<[1], [0], [0], [1], [0, 0, 1, 1], [], []>} : vector<2x1024xbf16>, vector<1024x10xbf16>, vector<2x10xf32> -> vector<2x10xf32>
    %c0_3 = arith.constant 0 : index
    %c0_4 = arith.constant 0 : index
    %3 = vector.load %arg3[%c0_3, %c0_4] : memref<1x10xf32, #tpu.memory_space<vmem>>, vector<1x10xf32>
    %4 = vector.broadcast %3 : vector<1x10xf32> to vector<2x10xf32>
    %5 = arith.addf %2, %4 : vector<2x10xf32>
    %cst_5 = arith.constant dense<0xFF800000> : vector<2xf32>
    %6 = vector.multi_reduction <maximumf>, %5, %cst_5 [1] : vector<2x10xf32> to vector<2xf32>
    %7 = vector.shape_cast %6 : vector<2xf32> to vector<2x1xf32>
    %8 = vector.broadcast %7 : vector<2x1xf32> to vector<2x10xf32>
    %9 = arith.subf %5, %8 : vector<2x10xf32>
    %10 = math.exp %9 : vector<2x10xf32>
    %cst_6 = arith.constant dense<0.000000e+00> : vector<2xf32>
    %11 = vector.multi_reduction <add>, %10, %cst_6 [1] : vector<2x10xf32> to vector<2xf32>
    %12 = vector.shape_cast %11 : vector<2xf32> to vector<2x1xf32>
    %13 = math.log %12 : vector<2x1xf32>
    %14 = vector.broadcast %13 : vector<2x1xf32> to vector<2x10xf32>
    %15 = arith.subf %9, %14 : vector<2x10xf32>
    %c0_7 = arith.constant 0 : index
    %c0_8 = arith.constant 0 : index
    %16 = vector.load %arg4[%c0_7, %c0_8] : memref<2x10xf32, #tpu.memory_space<vmem>>, vector<2x10xf32>
    tpu.vector_store %arg4[%c0_7, %c0_8], %15 {strides = array<i32>} : memref<2x10xf32, #tpu.memory_space<vmem>>, vector<2x10xf32>,
    return
  }
  func.func @transform_0(%arg0: i32) -> (i32, i32) {
    %c0_i32 = arith.constant 0 : i32
    %c0_i32_0 = arith.constant 0 : i32
    return %arg0, %c0_i32 : i32, i32
  }
  func.func @transform_1(%arg0: i32) -> (i32, i32) {
    %c0_i32 = arith.constant 0 : i32
    %c0_i32_0 = arith.constant 0 : i32
    %c0_i32_1 = arith.constant 0 : i32
    return %c0_i32, %c0_i32_0 : i32, i32
  }
  func.func @transform_2(%arg0: i32) -> (i32, i32) {
    %c0_i32 = arith.constant 0 : i32
    %c0_i32_0 = arith.constant 0 : i32
    %c0_i32_1 = arith.constant 0 : i32
    return %c0_i32, %c0_i32_0 : i32, i32
  }
  func.func @transform_3(%arg0: i32) -> (i32, i32) {
    %c0_i32 = arith.constant 0 : i32
    %c0_i32_0 = arith.constant 0 : i32
    return %arg0, %c0_i32 : i32, i32
  }
}

</mosaic_0001>

<llo_original>
// kernel: forward.3
$region0: #{forward.3}
  #allocation0 [shape = 'u32[]', space=smem, size = 0x4, offset = 0x4, fixed_abs, tag = 'smem constant byte address 0x4 - core index']
  #allocation1 [shape = 'u32[144,128]{1,0:T(1,128)}', space=vmem, size = 0x12000, scoped, tag = 'internal scratch']
  %s0 = inlined_call_operand.vmem [shape: bf16[2,576,25], index: 0, kind: input, shape index: {}]
  %s1 = inlined_call_operand.vmem [shape: bf16[25,32], index: 1, kind: input, shape index: {}]
  %s2 = inlined_call_operand.vmem [shape: f32[1,32], index: 2, kind: input, shape index: {}]
  %s3 = inlined_call_operand.vmem [shape: bf16[2,144,32], index: 3, kind: output, shape index: {}]
  %s4 = sld [smem:[#allocation0]]
  $region45: #{forward.3} parent=0
    _
  %s6 = ssub.s32 1, %s4
  %s7 = scalar_select 0, %s6, %s4
  loop: start=0, step=1, limit=4
  $region2: #{forward.3} parent=0 // loop_pre_header
    _
  $region3: #{forward.3} parent=0 // loop_header
    %s9 = sphi 0, %s13
    %p10 = scmp.ge.s32.totalorder %s9, 4
    %s19 = sphi 0, %s21
    %s22 = sphi 0, %s19
    %s23 = sphi 0, %s22
    %s39 = sphi 0, %s23
    %s43 = sphi 0, %s43
    %s45 = sphi 0, %s43
    %s46 = sphi 0, %s45
    %s60 = sphi 0, %s46
    %s64 = sphi 0, %s64
    %s66 = sphi 0, %s64
    %s67 = sphi 0, %s66
    %s81 = sphi 0, %s67
    %s87 = sphi 0, %s89
    %s90 = sphi 0, %s87
    %s91 = sphi 0, %s90
    %s107 = sphi 0, %s91
  $region4: #{forward.3} parent=0 // loop_header_branch
    %12 = sbr.rel (%p10) target = $region8
  $region5: #{forward.3} parent=0 // loop_body
    %s14 = ssub.s32 %s9, 1
    %s15 = ssub.s32 %s9, 2
    %s16 = sadd.s32 %s9, 1
    %s17 = ssub.s32 %s9, %s16
    %p18 = scmp.eq.s32.totalorder %s17, 0
    %s20 = sadd.s32 %s19, 1
    %s21 = scalar_select %p18, %s19, %s20
    %p24 = pneg %p18
    %p25 = scmp.eq.s32.totalorder %s9, 1
    %p26 = por %p24, %p25
    %p27 = scmp.ne.s32.totalorder %s19, %s22
    %p28 = scmp.eq.s32.totalorder %s9, 0
    %p29 = por %p27, %p28
    %p30 = scmp.ne.s32.totalorder %s19, %s22
    %p31 = scmp.eq.s32.totalorder %s14, 1
    %p32 = por %p30, %p31
    %p33 = scmp.ne.s32.totalorder %s22, %s23
    %p34 = scmp.eq.s32.totalorder %s14, 0
    %p35 = por %p33, %p34
    %p36 = scmp.ne.s32.totalorder %s22, %s23
    %p37 = scmp.eq.s32.totalorder %s15, 1
    %p38 = por %p36, %p37
    %p40 = scmp.ne.s32.totalorder %s23, %s39
    %p41 = scmp.eq.s32.totalorder %s15, 0
    %p42 = por %p40, %p41
    %s44 = sadd.s32 %s43, 1
    %p47 = scmp.eq.s32.totalorder %s9, 1
    %p48 = scmp.ne.s32.totalorder %s43, %s45
    %p49 = scmp.eq.s32.totalorder %s9, 0
    %p50 = por %p48, %p49
    %p51 = scmp.ne.s32.totalorder %s43, %s45
    %p52 = scmp.eq.s32.totalorder %s14, 1
    %p53 = por %p51, %p52
    %p54 = scmp.ne.s32.totalorder %s45, %s46
    %p55 = scmp.eq.s32.totalorder %s14, 0
    %p56 = por %p54, %p55
    %p57 = scmp.ne.s32.totalorder %s45, %s46
    %p58 = scmp.eq.s32.totalorder %s15, 1
    %p59 = por %p57, %p58
    %p61 = scmp.ne.s32.totalorder %s46, %s60
    %p62 = scmp.eq.s32.totalorder %s15, 0
    %p63 = por %p61, %p62
    %s65 = sadd.s32 %s64, 1
    %p68 = scmp.eq.s32.totalorder %s9, 1
    %p69 = scmp.ne.s32.totalorder %s64, %s66
    %p70 = scmp.eq.s32.totalorder %s9, 0
    %p71 = por %p69, %p70
    %p72 = scmp.ne.s32.totalorder %s64, %s66
    %p73 = scmp.eq.s32.totalorder %s14, 1
    %p74 = por %p72, %p73
    %p75 = scmp.ne.s32.totalorder %s66, %s67
    %p76 = scmp.eq.s32.totalorder %s14, 0
    %p77 = por %p75, %p76
    %p78 = scmp.ne.s32.totalorder %s66, %s67
    %p79 = scmp.eq.s32.totalorder %s15, 1
    %p80 = por %p78, %p79
    %p82 = scmp.ne.s32.totalorder %s67, %s81
    %p83 = scmp.eq.s32.totalorder %s15, 0
    %p84 = por %p82, %p83
    %s85 = ssub.s32 %s9, %s16
    %p86 = scmp.eq.s32.totalorder %s85, 0
    %s88 = sadd.s32 %s87, 1
    %s89 = scalar_select %p86, %s87, %s88
    %p92 = pneg %p86
    %p93 = scmp.eq.s32.totalorder %s9, 1
    %p94 = por %p92, %p93
    %p95 = scmp.ne.s32.totalorder %s87, %s90
    %p96 = scmp.eq.s32.totalorder %s9, 0
    %p97 = por %p95, %p96
    %p98 = scmp.ne.s32.totalorder %s87, %s90
    %p99 = scmp.eq.s32.totalorder %s14, 1
    %p100 = por %p98, %p99
    %p101 = scmp.ne.s32.totalorder %s90, %s91
    %p102 = scmp.eq.s32.totalorder %s14, 0
    %p103 = por %p101, %p102
    %p104 = scmp.ne.s32.totalorder %s90, %s91
    %p105 = scmp.eq.s32.totalorder %s15, 1
    %p106 = por %p104, %p105
    %p108 = scmp.ne.s32.totalorder %s91, %s107
    %p109 = scmp.eq.s32.totalorder %s15, 0
    %p110 = por %p108, %p109
    %p111 = scmp.le.s32.totalorder 1, %s9
    %p112 = scmp.lt.s32.totalorder %s9, 3
    %p113 = pnand %p111, %p112
    %p114 = pneg %p113
    // Predicated region
    $region9: #{forward.3} parent=5 // pred_check
      _
    $region10: #{forward.3} parent=5 // pred_check_branch
      %116 = sbr.rel (%p113) target = $region12
    $region11: #{forward.3} parent=5 // pred_region
      %s117 = ssub.s32 %s9, 1
      // Predicated region
      $region13: #{forward.3} parent=11 // pred_check
        %p118 = pneg %p56
      $region14: #{forward.3} parent=11 // pred_check_branch
        %120 = sbr.rel (%p118) target = $region16
      $region15: #{forward.3} parent=11 // pred_region
        _
      $region16: #{forward.3} parent=11 // pred_fallthru
        _
      // Predicated region
      $region17: #{forward.3} parent=11 // pred_check
        %p121 = pneg %p77
      $region18: #{forward.3} parent=11 // pred_check_branch
        %123 = sbr.rel (%p121) target = $region20
      $region19: #{forward.3} parent=11 // pred_region
        _
      $region20: #{forward.3} parent=11 // pred_fallthru
        _
    $region12: #{forward.3} parent=5 // pred_fallthru
      _
    %p124 = scmp.lt.s32.totalorder %s9, 2
    // Predicated region
    $region21: #{forward.3} parent=5 // pred_check
      %p125 = pneg %p124
    $region22: #{forward.3} parent=5 // pred_check_branch
      %127 = sbr.rel (%p125) target = $region24
    $region23: #{forward.3} parent=5 // pred_region
      // Predicated region
      $region25: #{forward.3} parent=23 // pred_check
        %p128 = pneg %p29
      $region26: #{forward.3} parent=23 // pred_check_branch
        %130 = sbr.rel (%p128) target = $region28
      $region27: #{forward.3} parent=23 // pred_region
        %p131 = scmp.lt.s32.totalorder %s9, 1
        %s132 = scalar_select %p131, %s9, 1
        %s133 = smul.addr %s132, 72
        %s134 = smul.addr %s133, 4
        %s135 = scalar_lea.vmem %s0, %s134
      $region28: #{forward.3} parent=23 // pred_fallthru
        _
    $region24: #{forward.3} parent=5 // pred_fallthru
      _
    %p136 = scmp.le.s32.totalorder 1, %s9
    %p137 = scmp.lt.s32.totalorder %s9, 3
    %p138 = pnand %p136, %p137
    %p139 = pneg %p138
    // Predicated region
    $region29: #{forward.3} parent=5 // pred_check
      _
    $region30: #{forward.3} parent=5 // pred_check_branch
      %141 = sbr.rel (%p138) target = $region32
    $region31: #{forward.3} parent=5 // pred_region
      %s142 = ssub.s32 %s9, 1
      %p143 = scmp.lt.s32.totalorder %s14, 1
      %s144 = scalar_select %p143, %s14, 1
      %s145 = smul.addr %s144, 72
      %s146 = smul.addr %s145, 4
      %s147 = scalar_lea.vmem %s0, %s146
      %p148 = pneg %p35
      %p149 = pneg %p32
      %p150 = pneg %p56
      %p151 = pneg %p53
      %p152 = pneg %p77
      %p153 = pneg %p74
      %p154 = pneg %p103
      %p155 = pneg %p100
      %p156 = scmp.lt.s32.totalorder %s14, 1
      %s157 = scalar_select %p156, %s14, 1
      %s158 = smul.addr %s157, 18
      %s159 = smul.addr %s158, 4
      %s160 = scalar_lea.vmem %s3, %s159
      %p161 = scmp.lt.s32.totalorder %s14, 1
      %s162 = scalar_select %p161, %s14, 1
      %s163 = smul.addr %s162, 72
      %s164 = smul.addr %s163, 4
      %s165 = scalar_lea.vmem %s0, %s164
      %p166 = scmp.lt.s32.totalorder %s14, 1
      %s167 = scalar_select %p166, %s14, 1
      %s168 = smul.addr %s167, 18
      %s169 = smul.addr %s168, 4
      %s170 = scalar_lea.vmem %s3, %s169
      %v172 = vld [vmem:[%s165] sm:$0xf]
      %v173 = vld [vmem:[%s165 + $0x4] sm:$0xf]
      %v174 = vld [vmem:[%s165 + $0x8] sm:$0xf]
      %v175 = vld [vmem:[%s165 + $0xc] sm:$0xf]
      %v176 = vld [vmem:[%s165 + $0x10] sm:$0xf]
      %v177 = vld [vmem:[%s165 + $0x14] sm:$0xf]
      %v178 = vld [vmem:[%s165 + $0x18] sm:$0xf]
      %v179 = vld [vmem:[%s165 + $0x1c] sm:$0xf]
      %v180 = vld [vmem:[%s165 + $0x20] sm:$0xf]
      %v181 = vld [vmem:[%s165 + $0x24] sm:$0xf]
      %v182 = vld [vmem:[%s165 + $0x28] sm:$0xf]
      %v183 = vld [vmem:[%s165 + $0x2c] sm:$0xf]
      %v184 = vld [vmem:[%s165 + $0x30] sm:$0xf]
      %v185 = vld [vmem:[%s165 + $0x34] sm:$0xf]
      %v186 = vld [vmem:[%s165 + $0x38] sm:$0xf]
      %v187 = vld [vmem:[%s165 + $0x3c] sm:$0xf]
      %v188 = vld [vmem:[%s165 + $0x40] sm:$0xf]
      %v189 = vld [vmem:[%s165 + $0x44] sm:$0xf]
      %v190 = vld [vmem:[%s165 + $0x48] sm:$0xf]
      %v191 = vld [vmem:[%s165 + $0x4c] sm:$0xf]
      %v192 = vld [vmem:[%s165 + $0x50] sm:$0xf]
      %v193 = vld [vmem:[%s165 + $0x54] sm:$0xf]
      %v194 = vld [vmem:[%s165 + $0x58] sm:$0xf]
      %v195 = vld [vmem:[%s165 + $0x5c] sm:$0xf]
      %v196 = vld [vmem:[%s165 + $0x60] sm:$0xf]
      %v197 = vld [vmem:[%s165 + $0x64] sm:$0xf]
      %v198 = vld [vmem:[%s165 + $0x68] sm:$0xf]
      %v199 = vld [vmem:[%s165 + $0x6c] sm:$0xf]
      %v200 = vld [vmem:[%s165 + $0x70] sm:$0xf]
      %v201 = vld [vmem:[%s165 + $0x74] sm:$0xf]
      %v202 = vld [vmem:[%s165 + $0x78] sm:$0xf]
      %v203 = vld [vmem:[%s165 + $0x7c] sm:$0xf]
      %v204 = vld [vmem:[%s165 + $0x80] sm:$0xf]
      %v205 = vld [vmem:[%s165 + $0x84] sm:$0xf]
      %v206 = vld [vmem:[%s165 + $0x88] sm:$0xf]
      %v207 = vld [vmem:[%s165 + $0x8c] sm:$0xf]
      %v208 = vld [vmem:[%s165 + $0x90] sm:$0xf]
      %v209 = vld [vmem:[%s165 + $0x94] sm:$0xf]
      %v210 = vld [vmem:[%s165 + $0x98] sm:$0xf]
      %v211 = vld [vmem:[%s165 + $0x9c] sm:$0xf]
      %v212 = vld [vmem:[%s165 + $0xa0] sm:$0xf]
      %v213 = vld [vmem:[%s165 + $0xa4] sm:$0xf]
      %v214 = vld [vmem:[%s165 + $0xa8] sm:$0xf]
      %v215 = vld [vmem:[%s165 + $0xac] sm:$0xf]
      %v216 = vld [vmem:[%s165 + $0xb0] sm:$0xf]
      %v217 = vld [vmem:[%s165 + $0xb4] sm:$0xf]
      %v218 = vld [vmem:[%s165 + $0xb8] sm:$0xf]
      %v219 = vld [vmem:[%s165 + $0xbc] sm:$0xf]
      %v220 = vld [vmem:[%s165 + $0xc0] sm:$0xf]
      %v221 = vld [vmem:[%s165 + $0xc4] sm:$0xf]
      %v222 = vld [vmem:[%s165 + $0xc8] sm:$0xf]
      %v223 = vld [vmem:[%s165 + $0xcc] sm:$0xf]
      %v224 = vld [vmem:[%s165 + $0xd0] sm:$0xf]
      %v225 = vld [vmem:[%s165 + $0xd4] sm:$0xf]
      %v226 = vld [vmem:[%s165 + $0xd8] sm:$0xf]
      %v227 = vld [vmem:[%s165 + $0xdc] sm:$0xf]
      %v228 = vld [vmem:[%s165 + $0xe0] sm:$0xf]
      %v229 = vld [vmem:[%s165 + $0xe4] sm:$0xf]
      %v230 = vld [vmem:[%s165 + $0xe8] sm:$0xf]
      %v231 = vld [vmem:[%s165 + $0xec] sm:$0xf]
      %v232 = vld [vmem:[%s165 + $0xf0] sm:$0xf]
      %v233 = vld [vmem:[%s165 + $0xf4] sm:$0xf]
      %v234 = vld [vmem:[%s165 + $0xf8] sm:$0xf]
      %v235 = vld [vmem:[%s165 + $0xfc] sm:$0xf]
      %v236 = vld [vmem:[%s165 + $0x100] sm:$0xf]
      %v237 = vld [vmem:[%s165 + $0x104] sm:$0xf]
      %v238 = vld [vmem:[%s165 + $0x108] sm:$0xf]
      %v239 = vld [vmem:[%s165 + $0x10c] sm:$0xf]
      %v240 = vld [vmem:[%s165 + $0x110] sm:$0xf]
      %v241 = vld [vmem:[%s165 + $0x114] sm:$0xf]
      %v242 = vld [vmem:[%s165 + $0x118] sm:$0xf]
      %v243 = vld [vmem:[%s165 + $0x11c] sm:$0xf]
      %v244 = vld [vmem:[%s1] sm:$0xf]
      %v245 = vld [vmem:[%s1 + $0x4] sm:$0xf]
      %v246 = vld [vmem:[%s1 + $0x8] sm:$0xf]
      %v247 = vld [vmem:[%s1 + $0xc] sm:$0x1]
      %v248 = vld [vmem:[%s2] sm:$0x1]
      %v250 = vlaneseq
      %v251 = vshrl.u32 %v250, 7
      %v252 = vsub.s32 0, %v251
      %v253 = vrot.slane %v248, %v252
      %v327 = vunpack.c.l.b16 %v172
      %v328 = vunpack.c.l.b16 %v173
      %v329 = vunpack.c.l.b16 %v174
      %v330 = vunpack.c.l.b16 %v175
      %v331 = vunpack.c.l.b16 %v176
      %v332 = vunpack.c.l.b16 %v177
      %v333 = vunpack.c.l.b16 %v178
      %v334 = vunpack.c.l.b16 %v179
      %v335 = vunpack.c.l.b16 %v180
      %v336 = vunpack.c.l.b16 %v181
      %v337 = vunpack.c.l.b16 %v182
      %v338 = vunpack.c.l.b16 %v183
      %v339 = vunpack.c.l.b16 %v184
      %v340 = vunpack.c.l.b16 %v185
      %v341 = vunpack.c.l.b16 %v186
      %v342 = vunpack.c.l.b16 %v187
      %v343 = vunpack.c.l.b16 %v188
      %v344 = vunpack.c.l.b16 %v189
      %v345 = vunpack.c.l.b16 %v190
      %v346 = vunpack.c.l.b16 %v191
      %v347 = vunpack.c.l.b16 %v192
      %v348 = vunpack.c.l.b16 %v193
      %v349 = vunpack.c.l.b16 %v194
      %v350 = vunpack.c.l.b16 %v195
      %v351 = vunpack.c.l.b16 %v196
      %v352 = vunpack.c.l.b16 %v197
      %v353 = vunpack.c.l.b16 %v198
      %v354 = vunpack.c.l.b16 %v199
      %v355 = vunpack.c.l.b16 %v200
      %v356 = vunpack.c.l.b16 %v201
      %v357 = vunpack.c.l.b16 %v202
      %v358 = vunpack.c.l.b16 %v203
      %v359 = vunpack.c.l.b16 %v204
      %v360 = vunpack.c.l.b16 %v205
      %v361 = vunpack.c.l.b16 %v206
      %v362 = vunpack.c.l.b16 %v207
      %v363 = vunpack.c.l.b16 %v208
      %v364 = vunpack.c.l.b16 %v209
      %v365 = vunpack.c.l.b16 %v210
      %v366 = vunpack.c.l.b16 %v211
      %v367 = vunpack.c.l.b16 %v212
      %v368 = vunpack.c.l.b16 %v213
      %v369 = vunpack.c.l.b16 %v214
      %v370 = vunpack.c.l.b16 %v215
      %v371 = vunpack.c.l.b16 %v216
      %v372 = vunpack.c.l.b16 %v217
      %v373 = vunpack.c.l.b16 %v218
      %v374 = vunpack.c.l.b16 %v219
      %v375 = vunpack.c.l.b16 %v220
      %v376 = vunpack.c.l.b16 %v221
      %v377 = vunpack.c.l.b16 %v222
      %v378 = vunpack.c.l.b16 %v223
      %v379 = vunpack.c.l.b16 %v224
      %v380 = vunpack.c.l.b16 %v225
      %v381 = vunpack.c.l.b16 %v226
      %v382 = vunpack.c.l.b16 %v227
      %v383 = vunpack.c.l.b16 %v228
      %v384 = vunpack.c.l.b16 %v229
      %v385 = vunpack.c.l.b16 %v230
      %v386 = vunpack.c.l.b16 %v231
      %v387 = vunpack.c.l.b16 %v232
      %v388 = vunpack.c.l.b16 %v233
      %v389 = vunpack.c.l.b16 %v234
      %v390 = vunpack.c.l.b16 %v235
      %v391 = vunpack.c.l.b16 %v236
      %v392 = vunpack.c.l.b16 %v237
      %v393 = vunpack.c.l.b16 %v238
      %v394 = vunpack.c.l.b16 %v239
      %v395 = vunpack.c.l.b16 %v240
      %v396 = vunpack.c.l.b16 %v241
      %v397 = vunpack.c.l.b16 %v242
      %v398 = vunpack.c.l.b16 %v243
      %v399 = vpack.c.b16 %v328, %v327
      %v400 = vpack.c.b16 %v330, %v329
      %v401 = vpack.c.b16 %v332, %v331
      %v402 = vpack.c.b16 %v334, %v333
      %v403 = vpack.c.b16 %v336, %v335
      %v404 = vpack.c.b16 %v338, %v337
      %v405 = vpack.c.b16 %v340, %v339
      %v406 = vpack.c.b16 %v342, %v341
      %v407 = vpack.c.b16 %v344, %v343
      %v408 = vpack.c.b16 %v346, %v345
      %v409 = vpack.c.b16 %v348, %v347
      %v410 = vpack.c.b16 %v350, %v349
      %v411 = vpack.c.b16 %v352, %v351
      %v412 = vpack.c.b16 %v354, %v353
      %v413 = vpack.c.b16 %v356, %v355
      %v414 = vpack.c.b16 %v358, %v357
      %v415 = vpack.c.b16 %v360, %v359
      %v416 = vpack.c.b16 %v362, %v361
      %v417 = vpack.c.b16 %v364, %v363
      %v418 = vpack.c.b16 %v366, %v365
      %v419 = vpack.c.b16 %v368, %v367
      %v420 = vpack.c.b16 %v370, %v369
      %v421 = vpack.c.b16 %v372, %v371
      %v422 = vpack.c.b16 %v374, %v373
      %v423 = vpack.c.b16 %v376, %v375
      %v424 = vpack.c.b16 %v378, %v377
      %v425 = vpack.c.b16 %v380, %v379
      %v426 = vpack.c.b16 %v382, %v381
      %v427 = vpack.c.b16 %v384, %v383
      %v428 = vpack.c.b16 %v386, %v385
      %v429 = vpack.c.b16 %v388, %v387
      %v430 = vpack.c.b16 %v390, %v389
      %v431 = vpack.c.b16 %v392, %v391
      %v432 = vpack.c.b16 %v394, %v393
      %v433 = vpack.c.b16 %v396, %v395
      %v434 = vpack.c.b16 %v398, %v397
      %v439 = vunpack.c.l.b16 %v244
      %v440 = vunpack.c.l.b16 %v245
      %v441 = vunpack.c.l.b16 %v246
      %v442 = vunpack.c.l.b16 %v247
      %v443 = vpack.c.b16 %v440, %v439
      %v444 = vpack.c.b16 %v442, %v441
      %vm446 = vcmask 203776
      %v448 = vsel %vm446, %v399, 0
      %v451 = vsel %vm446, %v400, 0
      %v454 = vsel %vm446, %v401, 0
      %v457 = vsel %vm446, %v402, 0
      %v460 = vsel %vm446, %v403, 0
      %v463 = vsel %vm446, %v404, 0
      %v466 = vsel %vm446, %v405, 0
      %v469 = vsel %vm446, %v406, 0
      %v472 = vsel %vm446, %v407, 0
      %v475 = vsel %vm446, %v408, 0
      %v478 = vsel %vm446, %v409, 0
      %v481 = vsel %vm446, %v410, 0
      %v484 = vsel %vm446, %v411, 0
      %v487 = vsel %vm446, %v412, 0
      %v490 = vsel %vm446, %v413, 0
      %v493 = vsel %vm446, %v414, 0
      %v496 = vsel %vm446, %v415, 0
      %v499 = vsel %vm446, %v416, 0
      %v502 = vsel %vm446, %v417, 0
      %v505 = vsel %vm446, %v418, 0
      %v508 = vsel %vm446, %v419, 0
      %v511 = vsel %vm446, %v420, 0
      %v514 = vsel %vm446, %v421, 0
      %v517 = vsel %vm446, %v422, 0
      %v520 = vsel %vm446, %v423, 0
      %v523 = vsel %vm446, %v424, 0
      %v526 = vsel %vm446, %v425, 0
      %v529 = vsel %vm446, %v426, 0
      %v532 = vsel %vm446, %v427, 0
      %v535 = vsel %vm446, %v428, 0
      %v538 = vsel %vm446, %v429, 0
      %v541 = vsel %vm446, %v430, 0
      %v544 = vsel %vm446, %v431, 0
      %v547 = vsel %vm446, %v432, 0
      %v550 = vsel %vm446, %v433, 0
      %v553 = vsel %vm446, %v434, 0
      %vm555 = vcmask 1043456
      %vm556 = vcmask 1044480
      %v557 = vsel %vm555, 4294967295, 65535
      %v558 = vsel %vm556, %v557, 0
      %v560 = vand.u32 %v444, %v558
      %562 = vmatprep.subr.bf16.mxu0 0
      %563 = vmatpush1.bf16.msra.mxu0 0
      %564 = vmatprep.subr.bf16.mxu0 0
      %565 = vmatpush1.bf16.msra.mxu0 0
      %566 = vmatprep.subr.bf16.mxu0 0
      %567 = vmatpush1.bf16.msra.mxu0 0
      %568 = vmatprep.subr.bf16.mxu0 0
      %569 = vmatpush1.bf16.msra.mxu0 0
      %570 = vmatprep.subr.bf16.mxu0 0
      %571 = vmatpush1.bf16.msra.mxu0 0
      %572 = vmatprep.subr.bf16.mxu0 0
      %573 = vmatpush1.bf16.msra.mxu0 0
      %574 = vmatprep.subr.bf16.mxu0 0
      %575 = vmatpush1.bf16.msra.mxu0 %v560
      %576 = vmatprep.subr.bf16.mxu0 0
      %577 = vmatpush1.bf16.msra.mxu0 %v443
      %578 = vmatprep.subr.bf16.mxu0 0
      %579 = vmatpush2.bf16.msra.mxu0 0
      %580 = vmatprep.subr.bf16.mxu0 0
      %581 = vmatpush2.bf16.msra.mxu0 0
      %582 = vmatprep.subr.bf16.mxu0 0
      %583 = vmatpush2.bf16.msra.mxu0 0
      %584 = vmatprep.subr.bf16.mxu0 0
      %585 = vmatpush2.bf16.msra.mxu0 0
      %586 = vmatprep.subr.bf16.mxu0 0
      %587 = vmatpush2.bf16.msra.mxu0 0
      %588 = vmatprep.subr.bf16.mxu0 0
      %589 = vmatpush2.bf16.msra.mxu0 0
      %590 = vmatprep.subr.bf16.mxu0 0
      %591 = vmatpush2.bf16.msra.mxu0 0
      %592 = vmatprep.subr.bf16.mxu0 0
      %593 = vmatpush2.bf16.msra.mxu0 0
      %594 = vmatprep.mubr.bf16.mxu0 0
      %595 = vmatmul.mubr.bf16.gmra.mxu0 %v448
      %v596 = vpop.f32.mrf.mxu0
      %v597 = vadd.f32 %v253, %v596
      %v598 = vpop.f32.mrf.mxu0
      %v599 = vpop.f32.mrf.mxu0
      %v600 = vadd.f32 %v253, %v599
      %v601 = vpop.f32.mrf.mxu0
      %602 = vmatprep.mubr.bf16.mxu0 0
      %603 = vmatmul.mubr.bf16.gmra.mxu0 %v451
      %v604 = vpop.f32.mrf.mxu0
      %v605 = vadd.f32 %v253, %v604
      %v606 = vpop.f32.mrf.mxu0
      %v607 = vpop.f32.mrf.mxu0
      %v608 = vadd.f32 %v253, %v607
      %v609 = vpop.f32.mrf.mxu0
      %610 = vmatprep.mubr.bf16.mxu0 0
      %611 = vmatmul.mubr.bf16.gmra.mxu0 %v454
      %v612 = vpop.f32.mrf.mxu0
      %v613 = vadd.f32 %v253, %v612
      %v614 = vpop.f32.mrf.mxu0
      %v615 = vpop.f32.mrf.mxu0
      %v616 = vadd.f32 %v253, %v615
      %v617 = vpop.f32.mrf.mxu0
      %618 = vmatprep.mubr.bf16.mxu0 0
      %619 = vmatmul.mubr.bf16.gmra.mxu0 %v457
      %v620 = vpop.f32.mrf.mxu0
      %v621 = vadd.f32 %v253, %v620
      %v622 = vpop.f32.mrf.mxu0
      %v623 = vpop.f32.mrf.mxu0
      %v624 = vadd.f32 %v253, %v623
      %v625 = vpop.f32.mrf.mxu0
      %626 = vmatprep.mubr.bf16.mxu0 0
      %627 = vmatmul.mubr.bf16.gmra.mxu0 %v460
      %v628 = vpop.f32.mrf.mxu0
      %v629 = vadd.f32 %v253, %v628
      %v630 = vpop.f32.mrf.mxu0
      %v631 = vpop.f32.mrf.mxu0
      %v632 = vadd.f32 %v253, %v631
      %v633 = vpop.f32.mrf.mxu0
      %634 = vmatprep.mubr.bf16.mxu0 0
      %635 = vmatmul.mubr.bf16.gmra.mxu0 %v463
      %v636 = vpop.f32.mrf.mxu0
      %v637 = vadd.f32 %v253, %v636
      %v638 = vpop.f32.mrf.mxu0
      %v639 = vpop.f32.mrf.mxu0
      %v640 = vadd.f32 %v253, %v639
      %v641 = vpop.f32.mrf.mxu0
      %642 = vmatprep.mubr.bf16.mxu0 0
      %643 = vmatmul.mubr.bf16.gmra.mxu0 %v466
      %v644 = vpop.f32.mrf.mxu0
      %v645 = vadd.f32 %v253, %v644
      %v646 = vpop.f32.mrf.mxu0
      %v647 = vpop.f32.mrf.mxu0
      %v648 = vadd.f32 %v253, %v647
      %v649 = vpop.f32.mrf.mxu0
      %650 = vmatprep.mubr.bf16.mxu0 0
      %651 = vmatmul.mubr.bf16.gmra.mxu0 %v469
      %v652 = vpop.f32.mrf.mxu0
      %v653 = vadd.f32 %v253, %v652
      %v654 = vpop.f32.mrf.mxu0
      %v655 = vpop.f32.mrf.mxu0
      %v656 = vadd.f32 %v253, %v655
      %v657 = vpop.f32.mrf.mxu0
      %658 = vmatprep.mubr.bf16.mxu0 0
      %659 = vmatmul.mubr.bf16.gmra.mxu0 %v472
      %v660 = vpop.f32.mrf.mxu0
      %v661 = vadd.f32 %v253, %v660
      %v662 = vpop.f32.mrf.mxu0
      %v663 = vpop.f32.mrf.mxu0
      %v664 = vadd.f32 %v253, %v663
      %v665 = vpop.f32.mrf.mxu0
      %666 = vmatprep.mubr.bf16.mxu0 0
      %667 = vmatmul.mubr.bf16.gmra.mxu0 %v475
      %v668 = vpop.f32.mrf.mxu0
      %v669 = vadd.f32 %v253, %v668
      %v670 = vpop.f32.mrf.mxu0
      %v671 = vpop.f32.mrf.mxu0
      %v672 = vadd.f32 %v253, %v671
      %v673 = vpop.f32.mrf.mxu0
      %674 = vmatprep.mubr.bf16.mxu0 0
      %675 = vmatmul.mubr.bf16.gmra.mxu0 %v478
      %v676 = vpop.f32.mrf.mxu0
      %v677 = vadd.f32 %v253, %v676
      %v678 = vpop.f32.mrf.mxu0
      %v679 = vpop.f32.mrf.mxu0
      %v680 = vadd.f32 %v253, %v679
      %v681 = vpop.f32.mrf.mxu0
      %682 = vmatprep.mubr.bf16.mxu0 0
      %683 = vmatmul.mubr.bf16.gmra.mxu0 %v481
      %v684 = vpop.f32.mrf.mxu0
      %v685 = vadd.f32 %v253, %v684
      %v686 = vpop.f32.mrf.mxu0
      %v687 = vpop.f32.mrf.mxu0
      %v688 = vadd.f32 %v253, %v687
      %v689 = vpop.f32.mrf.mxu0
      %690 = vmatprep.mubr.bf16.mxu0 0
      %691 = vmatmul.mubr.bf16.gmra.mxu0 %v484
      %v692 = vpop.f32.mrf.mxu0
      %v693 = vadd.f32 %v253, %v692
      %v694 = vpop.f32.mrf.mxu0
      %v695 = vpop.f32.mrf.mxu0
      %v696 = vadd.f32 %v253, %v695
      %v697 = vpop.f32.mrf.mxu0
      %698 = vmatprep.mubr.bf16.mxu0 0
      %699 = vmatmul.mubr.bf16.gmra.mxu0 %v487
      %v700 = vpop.f32.mrf.mxu0
      %v701 = vadd.f32 %v253, %v700
      %v702 = vpop.f32.mrf.mxu0
      %v703 = vpop.f32.mrf.mxu0
      %v704 = vadd.f32 %v253, %v703
      %v705 = vpop.f32.mrf.mxu0
      %706 = vmatprep.mubr.bf16.mxu0 0
      %707 = vmatmul.mubr.bf16.gmra.mxu0 %v490
      %v708 = vpop.f32.mrf.mxu0
      %v709 = vadd.f32 %v253, %v708
      %v710 = vpop.f32.mrf.mxu0
      %v711 = vpop.f32.mrf.mxu0
      %v712 = vadd.f32 %v253, %v711
      %v713 = vpop.f32.mrf.mxu0
      %714 = vmatprep.mubr.bf16.mxu0 0
      %715 = vmatmul.mubr.bf16.gmra.mxu0 %v493
      %v716 = vpop.f32.mrf.mxu0
      %v717 = vadd.f32 %v253, %v716
      %v718 = vpop.f32.mrf.mxu0
      %v719 = vpop.f32.mrf.mxu0
      %v720 = vadd.f32 %v253, %v719
      %v721 = vpop.f32.mrf.mxu0
      %722 = vmatprep.mubr.bf16.mxu0 0
      %723 = vmatmul.mubr.bf16.gmra.mxu0 %v496
      %v724 = vpop.f32.mrf.mxu0
      %v725 = vadd.f32 %v253, %v724
      %v726 = vpop.f32.mrf.mxu0
      %v727 = vpop.f32.mrf.mxu0
      %v728 = vadd.f32 %v253, %v727
      %v729 = vpop.f32.mrf.mxu0
      %730 = vmatprep.mubr.bf16.mxu0 0
      %731 = vmatmul.mubr.bf16.gmra.mxu0 %v499
      %v732 = vpop.f32.mrf.mxu0
      %v733 = vadd.f32 %v253, %v732
      %v734 = vpop.f32.mrf.mxu0
      %v735 = vpop.f32.mrf.mxu0
      %v736 = vadd.f32 %v253, %v735
      %v737 = vpop.f32.mrf.mxu0
      %738 = vmatprep.mubr.bf16.mxu0 0
      %739 = vmatmul.mubr.bf16.gmra.mxu0 %v502
      %v740 = vpop.f32.mrf.mxu0
      %v741 = vadd.f32 %v253, %v740
      %v742 = vpop.f32.mrf.mxu0
      %v743 = vpop.f32.mrf.mxu0
      %v744 = vadd.f32 %v253, %v743
      %v745 = vpop.f32.mrf.mxu0
      %746 = vmatprep.mubr.bf16.mxu0 0
      %747 = vmatmul.mubr.bf16.gmra.mxu0 %v505
      %v748 = vpop.f32.mrf.mxu0
      %v749 = vadd.f32 %v253, %v748
      %v750 = vpop.f32.mrf.mxu0
      %v751 = vpop.f32.mrf.mxu0
      %v752 = vadd.f32 %v253, %v751
      %v753 = vpop.f32.mrf.mxu0
      %754 = vmatprep.mubr.bf16.mxu0 0
      %755 = vmatmul.mubr.bf16.gmra.mxu0 %v508
      %v756 = vpop.f32.mrf.mxu0
      %v757 = vadd.f32 %v253, %v756
      %v758 = vpop.f32.mrf.mxu0
      %v759 = vpop.f32.mrf.mxu0
      %v760 = vadd.f32 %v253, %v759
      %v761 = vpop.f32.mrf.mxu0
      %762 = vmatprep.mubr.bf16.mxu0 0
      %763 = vmatmul.mubr.bf16.gmra.mxu0 %v511
      %v764 = vpop.f32.mrf.mxu0
      %v765 = vadd.f32 %v253, %v764
      %v766 = vpop.f32.mrf.mxu0
      %v767 = vpop.f32.mrf.mxu0
      %v768 = vadd.f32 %v253, %v767
      %v769 = vpop.f32.mrf.mxu0
      %770 = vmatprep.mubr.bf16.mxu0 0
      %771 = vmatmul.mubr.bf16.gmra.mxu0 %v514
      %v772 = vpop.f32.mrf.mxu0
      %v773 = vadd.f32 %v253, %v772
      %v774 = vpop.f32.mrf.mxu0
      %v775 = vpop.f32.mrf.mxu0
      %v776 = vadd.f32 %v253, %v775
      %v777 = vpop.f32.mrf.mxu0
      %778 = vmatprep.mubr.bf16.mxu0 0
      %779 = vmatmul.mubr.bf16.gmra.mxu0 %v517
      %v780 = vpop.f32.mrf.mxu0
      %v781 = vadd.f32 %v253, %v780
      %v782 = vpop.f32.mrf.mxu0
      %v783 = vpop.f32.mrf.mxu0
      %v784 = vadd.f32 %v253, %v783
      %v785 = vpop.f32.mrf.mxu0
      %786 = vmatprep.mubr.bf16.mxu0 0
      %787 = vmatmul.mubr.bf16.gmra.mxu0 %v520
      %v788 = vpop.f32.mrf.mxu0
      %v789 = vadd.f32 %v253, %v788
      %v790 = vpop.f32.mrf.mxu0
      %v791 = vpop.f32.mrf.mxu0
      %v792 = vadd.f32 %v253, %v791
      %v793 = vpop.f32.mrf.mxu0
      %794 = vmatprep.mubr.bf16.mxu0 0
      %795 = vmatmul.mubr.bf16.gmra.mxu0 %v523
      %v796 = vpop.f32.mrf.mxu0
      %v797 = vadd.f32 %v253, %v796
      %v798 = vpop.f32.mrf.mxu0
      %v799 = vpop.f32.mrf.mxu0
      %v800 = vadd.f32 %v253, %v799
      %v801 = vpop.f32.mrf.mxu0
      %802 = vmatprep.mubr.bf16.mxu0 0
      %803 = vmatmul.mubr.bf16.gmra.mxu0 %v526
      %v804 = vpop.f32.mrf.mxu0
      %v805 = vadd.f32 %v253, %v804
      %v806 = vpop.f32.mrf.mxu0
      %v807 = vpop.f32.mrf.mxu0
      %v808 = vadd.f32 %v253, %v807
      %v809 = vpop.f32.mrf.mxu0
      %810 = vmatprep.mubr.bf16.mxu0 0
      %811 = vmatmul.mubr.bf16.gmra.mxu0 %v529
      %v812 = vpop.f32.mrf.mxu0
      %v813 = vadd.f32 %v253, %v812
      %v814 = vpop.f32.mrf.mxu0
      %v815 = vpop.f32.mrf.mxu0
      %v816 = vadd.f32 %v253, %v815
      %v817 = vpop.f32.mrf.mxu0
      %818 = vmatprep.mubr.bf16.mxu0 0
      %819 = vmatmul.mubr.bf16.gmra.mxu0 %v532
      %v820 = vpop.f32.mrf.mxu0
      %v821 = vadd.f32 %v253, %v820
      %v822 = vpop.f32.mrf.mxu0
      %v823 = vpop.f32.mrf.mxu0
      %v824 = vadd.f32 %v253, %v823
      %v825 = vpop.f32.mrf.mxu0
      %826 = vmatprep.mubr.bf16.mxu0 0
      %827 = vmatmul.mubr.bf16.gmra.mxu0 %v535
      %v828 = vpop.f32.mrf.mxu0
      %v829 = vadd.f32 %v253, %v828
      %v830 = vpop.f32.mrf.mxu0
      %v831 = vpop.f32.mrf.mxu0
      %v832 = vadd.f32 %v253, %v831
      %v833 = vpop.f32.mrf.mxu0
      %834 = vmatprep.mubr.bf16.mxu0 0
      %835 = vmatmul.mubr.bf16.gmra.mxu0 %v538
      %v836 = vpop.f32.mrf.mxu0
      %v837 = vadd.f32 %v253, %v836
      %v838 = vpop.f32.mrf.mxu0
      %v839 = vpop.f32.mrf.mxu0
      %v840 = vadd.f32 %v253, %v839
      %v841 = vpop.f32.mrf.mxu0
      %842 = vmatprep.mubr.bf16.mxu0 0
      %843 = vmatmul.mubr.bf16.gmra.mxu0 %v541
      %v844 = vpop.f32.mrf.mxu0
      %v845 = vadd.f32 %v253, %v844
      %v846 = vpop.f32.mrf.mxu0
      %v847 = vpop.f32.mrf.mxu0
      %v848 = vadd.f32 %v253, %v847
      %v849 = vpop.f32.mrf.mxu0
      %850 = vmatprep.mubr.bf16.mxu0 0
      %851 = vmatmul.mubr.bf16.gmra.mxu0 %v544
      %v852 = vpop.f32.mrf.mxu0
      %v853 = vadd.f32 %v253, %v852
      %v854 = vpop.f32.mrf.mxu0
      %v855 = vpop.f32.mrf.mxu0
      %v856 = vadd.f32 %v253, %v855
      %v857 = vpop.f32.mrf.mxu0
      %858 = vmatprep.mubr.bf16.mxu0 0
      %859 = vmatmul.mubr.bf16.gmra.mxu0 %v547
      %v860 = vpop.f32.mrf.mxu0
      %v861 = vadd.f32 %v253, %v860
      %v862 = vpop.f32.mrf.mxu0
      %v863 = vpop.f32.mrf.mxu0
      %v864 = vadd.f32 %v253, %v863
      %v865 = vpop.f32.mrf.mxu0
      %866 = vmatprep.mubr.bf16.mxu0 0
      %867 = vmatmul.mubr.bf16.gmra.mxu0 %v550
      %v868 = vpop.f32.mrf.mxu0
      %v869 = vadd.f32 %v253, %v868
      %v870 = vpop.f32.mrf.mxu0
      %v871 = vpop.f32.mrf.mxu0
      %v872 = vadd.f32 %v253, %v871
      %v873 = vpop.f32.mrf.mxu0
      %874 = vmatprep.mubr.bf16.mxu0 0
      %875 = vmatmul.mubr.bf16.gmra.mxu0 %v553
      %v876 = vpop.f32.mrf.mxu0
      %v877 = vadd.f32 %v253, %v876
      %v878 = vpop.f32.mrf.mxu0
      %v879 = vpop.f32.mrf.mxu0
      %v880 = vadd.f32 %v253, %v879
      %v881 = vpop.f32.mrf.mxu0
      %882 = vdwg.mxu0
      %v883 = vmax.f32 %v597, 0.0
      %v884 = vmax.f32 %v600, 0.0
      %v885 = vmax.f32 %v605, 0.0
      %v886 = vmax.f32 %v608, 0.0
      %v887 = vmax.f32 %v613, 0.0
      %v888 = vmax.f32 %v616, 0.0
      %v889 = vmax.f32 %v621, 0.0
      %v890 = vmax.f32 %v624, 0.0
      %v891 = vmax.f32 %v629, 0.0
      %v892 = vmax.f32 %v632, 0.0
      %v893 = vmax.f32 %v637, 0.0
      %v894 = vmax.f32 %v640, 0.0
      %v895 = vmax.f32 %v645, 0.0
      %v896 = vmax.f32 %v648, 0.0
      %v897 = vmax.f32 %v653, 0.0
      %v898 = vmax.f32 %v656, 0.0
      %v899 = vmax.f32 %v661, 0.0
      %v900 = vmax.f32 %v664, 0.0
      %v901 = vmax.f32 %v669, 0.0
      %v902 = vmax.f32 %v672, 0.0
      %v903 = vmax.f32 %v677, 0.0
      %v904 = vmax.f32 %v680, 0.0
      %v905 = vmax.f32 %v685, 0.0
      %v906 = vmax.f32 %v688, 0.0
      %v907 = vmax.f32 %v693, 0.0
      %v908 = vmax.f32 %v696, 0.0
      %v909 = vmax.f32 %v701, 0.0
      %v910 = vmax.f32 %v704, 0.0
      %v911 = vmax.f32 %v709, 0.0
      %v912 = vmax.f32 %v712, 0.0
      %v913 = vmax.f32 %v717, 0.0
      %v914 = vmax.f32 %v720, 0.0
      %v915 = vmax.f32 %v725, 0.0
      %v916 = vmax.f32 %v728, 0.0
      %v917 = vmax.f32 %v733, 0.0
      %v918 = vmax.f32 %v736, 0.0
      %v919 = vmax.f32 %v741, 0.0
      %v920 = vmax.f32 %v744, 0.0
      %v921 = vmax.f32 %v749, 0.0
      %v922 = vmax.f32 %v752, 0.0
      %v923 = vmax.f32 %v757, 0.0
      %v924 = vmax.f32 %v760, 0.0
      %v925 = vmax.f32 %v765, 0.0
      %v926 = vmax.f32 %v768, 0.0
      %v927 = vmax.f32 %v773, 0.0
      %v928 = vmax.f32 %v776, 0.0
      %v929 = vmax.f32 %v781, 0.0
      %v930 = vmax.f32 %v784, 0.0
      %v931 = vmax.f32 %v789, 0.0
      %v932 = vmax.f32 %v792, 0.0
      %v933 = vmax.f32 %v797, 0.0
      %v934 = vmax.f32 %v800, 0.0
      %v935 = vmax.f32 %v805, 0.0
      %v936 = vmax.f32 %v808, 0.0
      %v937 = vmax.f32 %v813, 0.0
      %v938 = vmax.f32 %v816, 0.0
      %v939 = vmax.f32 %v821, 0.0
      %v940 = vmax.f32 %v824, 0.0
      %v941 = vmax.f32 %v829, 0.0
      %v942 = vmax.f32 %v832, 0.0
      %v943 = vmax.f32 %v837, 0.0
      %v944 = vmax.f32 %v840, 0.0
      %v945 = vmax.f32 %v845, 0.0
      %v946 = vmax.f32 %v848, 0.0
      %v947 = vmax.f32 %v853, 0.0
      %v948 = vmax.f32 %v856, 0.0
      %v949 = vmax.f32 %v861, 0.0
      %v950 = vmax.f32 %v864, 0.0
      %v951 = vmax.f32 %v869, 0.0
      %v952 = vmax.f32 %v872, 0.0
      %v953 = vmax.f32 %v877, 0.0
      %v954 = vmax.f32 %v880, 0.0
      %v955 = vmax.f32 %v883, %v901
      %v956 = vmax.f32 %v884, %v902
      %v957 = vmax.f32 %v885, %v903
      %v958 = vmax.f32 %v886, %v904
      %v959 = vmax.f32 %v887, %v905
      %v960 = vmax.f32 %v888, %v906
      %v961 = vmax.f32 %v889, %v907
      %v962 = vmax.f32 %v890, %v908
      %v963 = vmax.f32 %v891, %v909
      %v964 = vmax.f32 %v892, %v910
      %v965 = vmax.f32 %v893, %v911
      %v966 = vmax.f32 %v894, %v912
      %v967 = vmax.f32 %v895, %v913
      %v968 = vmax.f32 %v896, %v914
      %v969 = vmax.f32 %v897, %v915
      %v970 = vmax.f32 %v898, %v916
      %v971 = vmax.f32 %v899, %v917
      %v972 = vmax.f32 %v900, %v918
      %v973 = vmax.f32 %v919, %v937
      %v974 = vmax.f32 %v920, %v938
      %v975 = vmax.f32 %v921, %v939
      %v976 = vmax.f32 %v922, %v940
      %v977 = vmax.f32 %v923, %v941
      %v978 = vmax.f32 %v924, %v942
      %v979 = vmax.f32 %v925, %v943
      %v980 = vmax.f32 %v926, %v944
      %v981 = vmax.f32 %v927, %v945
      %v982 = vmax.f32 %v928, %v946
      %v983 = vmax.f32 %v929, %v947
      %v984 = vmax.f32 %v930, %v948
      %v985 = vmax.f32 %v931, %v949
      %v986 = vmax.f32 %v932, %v950
      %v987 = vmax.f32 %v933, %v951
      %v988 = vmax.f32 %v934, %v952
      %v989 = vmax.f32 %v935, %v953
      %v990 = vmax.f32 %v936, %v954
      %v991 = vmax.f32 %v955, %v973
      %v992 = vmax.f32 %v956, %v974
      %v993 = vmax.f32 %v957, %v975
      %v994 = vmax.f32 %v958, %v976
      %v995 = vmax.f32 %v959, %v977
      %v996 = vmax.f32 %v960, %v978
      %v997 = vmax.f32 %v961, %v979
      %v998 = vmax.f32 %v962, %v980
      %v999 = vmax.f32 %v963, %v981
      %v1000 = vmax.f32 %v964, %v982
      %v1001 = vmax.f32 %v965, %v983
      %v1002 = vmax.f32 %v966, %v984
      %v1003 = vmax.f32 %v967, %v985
      %v1004 = vmax.f32 %v968, %v986
      %v1005 = vmax.f32 %v969, %v987
      %v1006 = vmax.f32 %v970, %v988
      %v1007 = vmax.f32 %v971, %v989
      %v1008 = vmax.f32 %v972, %v990
      %v1009 = vpack.c.bf16 %v992, %v991
      %v1010 = vpack.c.bf16 %v994, %v993
      %v1011 = vpack.c.bf16 %v996, %v995
      %v1012 = vpack.c.bf16 %v998, %v997
      %v1013 = vpack.c.bf16 %v1000, %v999
      %v1014 = vpack.c.bf16 %v1002, %v1001
      %v1015 = vpack.c.bf16 %v1004, %v1003
      %v1016 = vpack.c.bf16 %v1006, %v1005
      %v1017 = vpack.c.bf16 %v1008, %v1007
      %v1027 = vunpack.c.l.b16 %v1009
      %v1028 = vunpack.c.h.b16 %v1009
      %v1029 = vunpack.c.l.b16 %v1010
      %v1030 = vunpack.c.h.b16 %v1010
      %v1031 = vunpack.c.l.b16 %v1011
      %v1032 = vunpack.c.h.b16 %v1011
      %v1033 = vunpack.c.l.b16 %v1012
      %v1034 = vunpack.c.h.b16 %v1012
      %v1035 = vunpack.c.l.b16 %v1013
      %v1036 = vunpack.c.h.b16 %v1013
      %v1037 = vunpack.c.l.b16 %v1014
      %v1038 = vunpack.c.h.b16 %v1014
      %v1039 = vunpack.c.l.b16 %v1015
      %v1040 = vunpack.c.h.b16 %v1015
      %v1041 = vunpack.c.l.b16 %v1016
      %v1042 = vunpack.c.h.b16 %v1016
      %v1043 = vunpack.c.l.b16 %v1017
      %v1044 = vunpack.c.h.b16 %v1017
      %v1045 = vpack.c.b16 %v1027, %v1027
      %v1046 = vpack.c.b16 %v1028, %v1028
      %v1047 = vpack.c.b16 %v1029, %v1029
      %v1048 = vpack.c.b16 %v1030, %v1030
      %v1049 = vpack.c.b16 %v1031, %v1031
      %v1050 = vpack.c.b16 %v1032, %v1032
      %v1051 = vpack.c.b16 %v1033, %v1033
      %v1052 = vpack.c.b16 %v1034, %v1034
      %v1053 = vpack.c.b16 %v1035, %v1035
      %v1054 = vpack.c.b16 %v1036, %v1036
      %v1055 = vpack.c.b16 %v1037, %v1037
      %v1056 = vpack.c.b16 %v1038, %v1038
      %v1057 = vpack.c.b16 %v1039, %v1039
      %v1058 = vpack.c.b16 %v1040, %v1040
      %v1059 = vpack.c.b16 %v1041, %v1041
      %v1060 = vpack.c.b16 %v1042, %v1042
      %v1061 = vpack.c.b16 %v1043, %v1043
      %v1062 = vpack.c.b16 %v1044, %v1044
      %vm1081 = vcmask 257024
      %1082 = vst.msk [vmem:[%s170] sm:$0xf] %vm1081, %v1045
      %1083 = vst.msk [vmem:[%s170 + $0x4] sm:$0xf] %vm1081, %v1046
      %1084 = vst.msk [vmem:[%s170 + $0x8] sm:$0xf] %vm1081, %v1047
      %1085 = vst.msk [vmem:[%s170 + $0xc] sm:$0xf] %vm1081, %v1048
      %1086 = vst.msk [vmem:[%s170 + $0x10] sm:$0xf] %vm1081, %v1049
      %1087 = vst.msk [vmem:[%s170 + $0x14] sm:$0xf] %vm1081, %v1050
      %1088 = vst.msk [vmem:[%s170 + $0x18] sm:$0xf] %vm1081, %v1051
      %1089 = vst.msk [vmem:[%s170 + $0x1c] sm:$0xf] %vm1081, %v1052
      %1090 = vst.msk [vmem:[%s170 + $0x20] sm:$0xf] %vm1081, %v1053
      %1091 = vst.msk [vmem:[%s170 + $0x24] sm:$0xf] %vm1081, %v1054
      %1092 = vst.msk [vmem:[%s170 + $0x28] sm:$0xf] %vm1081, %v1055
      %1093 = vst.msk [vmem:[%s170 + $0x2c] sm:$0xf] %vm1081, %v1056
      %1094 = vst.msk [vmem:[%s170 + $0x30] sm:$0xf] %vm1081, %v1057
      %1095 = vst.msk [vmem:[%s170 + $0x34] sm:$0xf] %vm1081, %v1058
      %1096 = vst.msk [vmem:[%s170 + $0x38] sm:$0xf] %vm1081, %v1059
      %1097 = vst.msk [vmem:[%s170 + $0x3c] sm:$0xf] %vm1081, %v1060
      %1098 = vst.msk [vmem:[%s170 + $0x40] sm:$0xf] %vm1081, %v1061
      %1099 = vst.msk [vmem:[%s170 + $0x44] sm:$0xf] %vm1081, %v1062
      %p1100 = scmp.lt.s32.totalorder %s14, 1
      %s1101 = scalar_select %p1100, %s14, 1
      %s1102 = smul.addr %s1101, 18
      %s1103 = smul.addr %s1102, 4
      %s1104 = scalar_lea.vmem %s3, %s1103
      // Predicated region
      $region33: #{forward.3} parent=31 // pred_check
        %p1105 = pneg %p100
      $region34: #{forward.3} parent=31 // pred_check_branch
        %1107 = sbr.rel (%p1105) target = $region36
      $region35: #{forward.3} parent=31 // pred_region
        _
      $region36: #{forward.3} parent=31 // pred_fallthru
        _
    $region32: #{forward.3} parent=5 // pred_fallthru
      _
    %p1108 = scmp.le.s32.totalorder 2, %s9
    // Predicated region
    $region37: #{forward.3} parent=5 // pred_check
      %p1109 = pneg %p1108
    $region38: #{forward.3} parent=5 // pred_check_branch
      %1111 = sbr.rel (%p1109) target = $region40
    $region39: #{forward.3} parent=5 // pred_region
      %s1112 = ssub.s32 %s9, 2
      // Predicated region
      $region41: #{forward.3} parent=39 // pred_check
        %p1113 = pneg %p106
      $region42: #{forward.3} parent=39 // pred_check_branch
        %1115 = sbr.rel (%p1113) target = $region44
      $region43: #{forward.3} parent=39 // pred_region
        %p1116 = scmp.lt.s32.totalorder %s15, 1
        %s1117 = scalar_select %p1116, %s15, 1
        %s1118 = smul.addr %s1117, 18
        %s1119 = smul.addr %s1118, 4
        %s1120 = scalar_lea.vmem %s3, %s1119
      $region44: #{forward.3} parent=39 // pred_fallthru
        _
    $region40: #{forward.3} parent=5 // pred_fallthru
      _
  $region6: #{forward.3} parent=0 // loop_footer
    %s13 = sadd.s32 1, %s9
  $region7: #{forward.3} parent=0 // loop_footer_branch
    %8 = sbr.rel target = $region3
  $region8: #{forward.3} parent=0 // loop_exit
    _

// kernel: forward.4
$region0: #{forward.4}
  #allocation0 [shape = 'u32[]', space=smem, size = 0x4, offset = 0x4, fixed_abs, tag = 'smem constant byte address 0x4 - core index']
  #allocation1 [shape = 'u32[144,128]{1,0:T(1,128)}', space=vmem, size = 0x12000, scoped, tag = 'internal scratch']
  %s0 = inlined_call_operand.vmem [shape: bf16[2,64,800], index: 0, kind: input, shape index: {}]
  %s1 = inlined_call_operand.vmem [shape: bf16[800,64], index: 1, kind: input, shape index: {}]
  %s2 = inlined_call_operand.vmem [shape: f32[1,64], index: 2, kind: input, shape index: {}]
  %s3 = inlined_call_operand.vmem [shape: bf16[2,16,64], index: 3, kind: output, shape index: {}]
  %s4 = sld [smem:[#allocation0]]
  $region45: #{forward.4} parent=0
    _
  %s6 = ssub.s32 1, %s4
  %s7 = scalar_select 0, %s6, %s4
  loop: start=0, step=1, limit=4
  $region2: #{forward.4} parent=0 // loop_pre_header
    _
  $region3: #{forward.4} parent=0 // loop_header
    %s9 = sphi 0, %s13
    %p10 = scmp.ge.s32.totalorder %s9, 4
    %s19 = sphi 0, %s21
    %s22 = sphi 0, %s19
    %s23 = sphi 0, %s22
    %s39 = sphi 0, %s23
    %s43 = sphi 0, %s43
    %s45 = sphi 0, %s43
    %s46 = sphi 0, %s45
    %s60 = sphi 0, %s46
    %s64 = sphi 0, %s64
    %s66 = sphi 0, %s64
    %s67 = sphi 0, %s66
    %s81 = sphi 0, %s67
    %s87 = sphi 0, %s89
    %s90 = sphi 0, %s87
    %s91 = sphi 0, %s90
    %s107 = sphi 0, %s91
  $region4: #{forward.4} parent=0 // loop_header_branch
    %12 = sbr.rel (%p10) target = $region8
  $region5: #{forward.4} parent=0 // loop_body
    %s14 = ssub.s32 %s9, 1
    %s15 = ssub.s32 %s9, 2
    %s16 = sadd.s32 %s9, 1
    %s17 = ssub.s32 %s9, %s16
    %p18 = scmp.eq.s32.totalorder %s17, 0
    %s20 = sadd.s32 %s19, 1
    %s21 = scalar_select %p18, %s19, %s20
    %p24 = pneg %p18
    %p25 = scmp.eq.s32.totalorder %s9, 1
    %p26 = por %p24, %p25
    %p27 = scmp.ne.s32.totalorder %s19, %s22
    %p28 = scmp.eq.s32.totalorder %s9, 0
    %p29 = por %p27, %p28
    %p30 = scmp.ne.s32.totalorder %s19, %s22
    %p31 = scmp.eq.s32.totalorder %s14, 1
    %p32 = por %p30, %p31
    %p33 = scmp.ne.s32.totalorder %s22, %s23
    %p34 = scmp.eq.s32.totalorder %s14, 0
    %p35 = por %p33, %p34
    %p36 = scmp.ne.s32.totalorder %s22, %s23
    %p37 = scmp.eq.s32.totalorder %s15, 1
    %p38 = por %p36, %p37
    %p40 = scmp.ne.s32.totalorder %s23, %s39
    %p41 = scmp.eq.s32.totalorder %s15, 0
    %p42 = por %p40, %p41
    %s44 = sadd.s32 %s43, 1
    %p47 = scmp.eq.s32.totalorder %s9, 1
    %p48 = scmp.ne.s32.totalorder %s43, %s45
    %p49 = scmp.eq.s32.totalorder %s9, 0
    %p50 = por %p48, %p49
    %p51 = scmp.ne.s32.totalorder %s43, %s45
    %p52 = scmp.eq.s32.totalorder %s14, 1
    %p53 = por %p51, %p52
    %p54 = scmp.ne.s32.totalorder %s45, %s46
    %p55 = scmp.eq.s32.totalorder %s14, 0
    %p56 = por %p54, %p55
    %p57 = scmp.ne.s32.totalorder %s45, %s46
    %p58 = scmp.eq.s32.totalorder %s15, 1
    %p59 = por %p57, %p58
    %p61 = scmp.ne.s32.totalorder %s46, %s60
    %p62 = scmp.eq.s32.totalorder %s15, 0
    %p63 = por %p61, %p62
    %s65 = sadd.s32 %s64, 1
    %p68 = scmp.eq.s32.totalorder %s9, 1
    %p69 = scmp.ne.s32.totalorder %s64, %s66
    %p70 = scmp.eq.s32.totalorder %s9, 0
    %p71 = por %p69, %p70
    %p72 = scmp.ne.s32.totalorder %s64, %s66
    %p73 = scmp.eq.s32.totalorder %s14, 1
    %p74 = por %p72, %p73
    %p75 = scmp.ne.s32.totalorder %s66, %s67
    %p76 = scmp.eq.s32.totalorder %s14, 0
    %p77 = por %p75, %p76
    %p78 = scmp.ne.s32.totalorder %s66, %s67
    %p79 = scmp.eq.s32.totalorder %s15, 1
    %p80 = por %p78, %p79
    %p82 = scmp.ne.s32.totalorder %s67, %s81
    %p83 = scmp.eq.s32.totalorder %s15, 0
    %p84 = por %p82, %p83
    %s85 = ssub.s32 %s9, %s16
    %p86 = scmp.eq.s32.totalorder %s85, 0
    %s88 = sadd.s32 %s87, 1
    %s89 = scalar_select %p86, %s87, %s88
    %p92 = pneg %p86
    %p93 = scmp.eq.s32.totalorder %s9, 1
    %p94 = por %p92, %p93
    %p95 = scmp.ne.s32.totalorder %s87, %s90
    %p96 = scmp.eq.s32.totalorder %s9, 0
    %p97 = por %p95, %p96
    %p98 = scmp.ne.s32.totalorder %s87, %s90
    %p99 = scmp.eq.s32.totalorder %s14, 1
    %p100 = por %p98, %p99
    %p101 = scmp.ne.s32.totalorder %s90, %s91
    %p102 = scmp.eq.s32.totalorder %s14, 0
    %p103 = por %p101, %p102
    %p104 = scmp.ne.s32.totalorder %s90, %s91
    %p105 = scmp.eq.s32.totalorder %s15, 1
    %p106 = por %p104, %p105
    %p108 = scmp.ne.s32.totalorder %s91, %s107
    %p109 = scmp.eq.s32.totalorder %s15, 0
    %p110 = por %p108, %p109
    %p111 = scmp.le.s32.totalorder 1, %s9
    %p112 = scmp.lt.s32.totalorder %s9, 3
    %p113 = pnand %p111, %p112
    %p114 = pneg %p113
    // Predicated region
    $region9: #{forward.4} parent=5 // pred_check
      _
    $region10: #{forward.4} parent=5 // pred_check_branch
      %116 = sbr.rel (%p113) target = $region12
    $region11: #{forward.4} parent=5 // pred_region
      %s117 = ssub.s32 %s9, 1
      // Predicated region
      $region13: #{forward.4} parent=11 // pred_check
        %p118 = pneg %p56
      $region14: #{forward.4} parent=11 // pred_check_branch
        %120 = sbr.rel (%p118) target = $region16
      $region15: #{forward.4} parent=11 // pred_region
        _
      $region16: #{forward.4} parent=11 // pred_fallthru
        _
      // Predicated region
      $region17: #{forward.4} parent=11 // pred_check
        %p121 = pneg %p77
      $region18: #{forward.4} parent=11 // pred_check_branch
        %123 = sbr.rel (%p121) target = $region20
      $region19: #{forward.4} parent=11 // pred_region
        _
      $region20: #{forward.4} parent=11 // pred_fallthru
        _
    $region12: #{forward.4} parent=5 // pred_fallthru
      _
    %p124 = scmp.lt.s32.totalorder %s9, 2
    // Predicated region
    $region21: #{forward.4} parent=5 // pred_check
      %p125 = pneg %p124
    $region22: #{forward.4} parent=5 // pred_check_branch
      %127 = sbr.rel (%p125) target = $region24
    $region23: #{forward.4} parent=5 // pred_region
      // Predicated region
      $region25: #{forward.4} parent=23 // pred_check
        %p128 = pneg %p29
      $region26: #{forward.4} parent=23 // pred_check_branch
        %130 = sbr.rel (%p128) target = $region28
      $region27: #{forward.4} parent=23 // pred_region
        %p131 = scmp.lt.s32.totalorder %s9, 1
        %s132 = scalar_select %p131, %s9, 1
        %s133 = smul.addr %s132, 56
        %s134 = smul.addr %s133, 4
        %s135 = scalar_lea.vmem %s0, %s134
      $region28: #{forward.4} parent=23 // pred_fallthru
        _
    $region24: #{forward.4} parent=5 // pred_fallthru
      _
    %p136 = scmp.le.s32.totalorder 1, %s9
    %p137 = scmp.lt.s32.totalorder %s9, 3
    %p138 = pnand %p136, %p137
    %p139 = pneg %p138
    // Predicated region
    $region29: #{forward.4} parent=5 // pred_check
      _
    $region30: #{forward.4} parent=5 // pred_check_branch
      %141 = sbr.rel (%p138) target = $region32
    $region31: #{forward.4} parent=5 // pred_region
      %s142 = ssub.s32 %s9, 1
      %p143 = scmp.lt.s32.totalorder %s14, 1
      %s144 = scalar_select %p143, %s14, 1
      %s145 = smul.addr %s144, 56
      %s146 = smul.addr %s145, 4
      %s147 = scalar_lea.vmem %s0, %s146
      %p148 = pneg %p35
      %p149 = pneg %p32
      %p150 = pneg %p56
      %p151 = pneg %p53
      %p152 = pneg %p77
      %p153 = pneg %p74
      %p154 = pneg %p103
      %p155 = pneg %p100
      %p156 = scmp.lt.s32.totalorder %s14, 1
      %s157 = scalar_select %p156, %s14, 1
      %s158 = smul.addr %s157, 2
      %s159 = smul.addr %s158, 4
      %s160 = scalar_lea.vmem %s3, %s159
      %p161 = scmp.lt.s32.totalorder %s14, 1
      %s162 = scalar_select %p161, %s14, 1
      %s163 = smul.addr %s162, 56
      %s164 = smul.addr %s163, 4
      %s165 = scalar_lea.vmem %s0, %s164
      %p166 = scmp.lt.s32.totalorder %s14, 1
      %s167 = scalar_select %p166, %s14, 1
      %s168 = smul.addr %s167, 2
      %s169 = smul.addr %s168, 4
      %s170 = scalar_lea.vmem %s3, %s169
      %v172 = vld [vmem:[%s165] sm:$0xff]
      %v173 = vld [vmem:[%s165 + $0x8] sm:$0xff]
      %v174 = vld [vmem:[%s165 + $0x10] sm:$0xff]
      %v175 = vld [vmem:[%s165 + $0x18] sm:$0xf]
      %v176 = vld [vmem:[%s165 + $0x1c] sm:$0xff]
      %v177 = vld [vmem:[%s165 + $0x24] sm:$0xff]
      %v178 = vld [vmem:[%s165 + $0x2c] sm:$0xff]
      %v179 = vld [vmem:[%s165 + $0x34] sm:$0xf]
      %v180 = vld [vmem:[%s165 + $0x38] sm:$0xff]
      %v181 = vld [vmem:[%s165 + $0x40] sm:$0xff]
      %v182 = vld [vmem:[%s165 + $0x48] sm:$0xff]
      %v183 = vld [vmem:[%s165 + $0x50] sm:$0xf]
      %v184 = vld [vmem:[%s165 + $0x54] sm:$0xff]
      %v185 = vld [vmem:[%s165 + $0x5c] sm:$0xff]
      %v186 = vld [vmem:[%s165 + $0x64] sm:$0xff]
      %v187 = vld [vmem:[%s165 + $0x6c] sm:$0xf]
      %v188 = vld [vmem:[%s165 + $0x70] sm:$0xff]
      %v189 = vld [vmem:[%s165 + $0x78] sm:$0xff]
      %v190 = vld [vmem:[%s165 + $0x80] sm:$0xff]
      %v191 = vld [vmem:[%s165 + $0x88] sm:$0xf]
      %v192 = vld [vmem:[%s165 + $0x8c] sm:$0xff]
      %v193 = vld [vmem:[%s165 + $0x94] sm:$0xff]
      %v194 = vld [vmem:[%s165 + $0x9c] sm:$0xff]
      %v195 = vld [vmem:[%s165 + $0xa4] sm:$0xf]
      %v196 = vld [vmem:[%s165 + $0xa8] sm:$0xff]
      %v197 = vld [vmem:[%s165 + $0xb0] sm:$0xff]
      %v198 = vld [vmem:[%s165 + $0xb8] sm:$0xff]
      %v199 = vld [vmem:[%s165 + $0xc0] sm:$0xf]
      %v200 = vld [vmem:[%s165 + $0xc4] sm:$0xff]
      %v201 = vld [vmem:[%s165 + $0xcc] sm:$0xff]
      %v202 = vld [vmem:[%s165 + $0xd4] sm:$0xff]
      %v203 = vld [vmem:[%s165 + $0xdc] sm:$0xf]
      %v204 = vld [vmem:[%s1] sm:$0xf]
      %v205 = vld [vmem:[%s1 + $0x4] sm:$0xf]
      %v206 = vld [vmem:[%s1 + $0x8] sm:$0xf]
      %v207 = vld [vmem:[%s1 + $0xc] sm:$0xf]
      %v208 = vld [vmem:[%s1 + $0x10] sm:$0xf]
      %v209 = vld [vmem:[%s1 + $0x14] sm:$0xf]
      %v210 = vld [vmem:[%s1 + $0x18] sm:$0xf]
      %v211 = vld [vmem:[%s1 + $0x1c] sm:$0xf]
      %v212 = vld [vmem:[%s1 + $0x20] sm:$0xf]
      %v213 = vld [vmem:[%s1 + $0x24] sm:$0xf]
      %v214 = vld [vmem:[%s1 + $0x28] sm:$0xf]
      %v215 = vld [vmem:[%s1 + $0x2c] sm:$0xf]
      %v216 = vld [vmem:[%s1 + $0x30] sm:$0xf]
      %v217 = vld [vmem:[%s1 + $0x34] sm:$0xf]
      %v218 = vld [vmem:[%s1 + $0x38] sm:$0xf]
      %v219 = vld [vmem:[%s1 + $0x3c] sm:$0xf]
      %v220 = vld [vmem:[%s1 + $0x40] sm:$0xf]
      %v221 = vld [vmem:[%s1 + $0x44] sm:$0xf]
      %v222 = vld [vmem:[%s1 + $0x48] sm:$0xf]
      %v223 = vld [vmem:[%s1 + $0x4c] sm:$0xf]
      %v224 = vld [vmem:[%s1 + $0x50] sm:$0xf]
      %v225 = vld [vmem:[%s1 + $0x54] sm:$0xf]
      %v226 = vld [vmem:[%s1 + $0x58] sm:$0xf]
      %v227 = vld [vmem:[%s1 + $0x5c] sm:$0xf]
      %v228 = vld [vmem:[%s1 + $0x60] sm:$0xf]
      %v229 = vld [vmem:[%s1 + $0x64] sm:$0xf]
      %v230 = vld [vmem:[%s1 + $0x68] sm:$0xf]
      %v231 = vld [vmem:[%s1 + $0x6c] sm:$0xf]
      %v232 = vld [vmem:[%s1 + $0x70] sm:$0xf]
      %v233 = vld [vmem:[%s1 + $0x74] sm:$0xf]
      %v234 = vld [vmem:[%s1 + $0x78] sm:$0xf]
      %v235 = vld [vmem:[%s1 + $0x7c] sm:$0xf]
      %v236 = vld [vmem:[%s1 + $0x80] sm:$0xf]
      %v237 = vld [vmem:[%s1 + $0x84] sm:$0xf]
      %v238 = vld [vmem:[%s1 + $0x88] sm:$0xf]
      %v239 = vld [vmem:[%s1 + $0x8c] sm:$0xf]
      %v240 = vld [vmem:[%s1 + $0x90] sm:$0xf]
      %v241 = vld [vmem:[%s1 + $0x94] sm:$0xf]
      %v242 = vld [vmem:[%s1 + $0x98] sm:$0xf]
      %v243 = vld [vmem:[%s1 + $0x9c] sm:$0xf]
      %v244 = vld [vmem:[%s1 + $0xa0] sm:$0xf]
      %v245 = vld [vmem:[%s1 + $0xa4] sm:$0xf]
      %v246 = vld [vmem:[%s1 + $0xa8] sm:$0xf]
      %v247 = vld [vmem:[%s1 + $0xac] sm:$0xf]
      %v248 = vld [vmem:[%s1 + $0xb0] sm:$0xf]
      %v249 = vld [vmem:[%s1 + $0xb4] sm:$0xf]
      %v250 = vld [vmem:[%s1 + $0xb8] sm:$0xf]
      %v251 = vld [vmem:[%s1 + $0xbc] sm:$0xf]
      %v252 = vld [vmem:[%s1 + $0xc0] sm:$0xf]
      %v253 = vld [vmem:[%s1 + $0xc4] sm:$0xf]
      %v254 = vld [vmem:[%s1 + $0xc8] sm:$0xf]
      %v255 = vld [vmem:[%s1 + $0xcc] sm:$0xf]
      %v256 = vld [vmem:[%s1 + $0xd0] sm:$0xf]
      %v257 = vld [vmem:[%s1 + $0xd4] sm:$0xf]
      %v258 = vld [vmem:[%s1 + $0xd8] sm:$0xf]
      %v259 = vld [vmem:[%s1 + $0xdc] sm:$0xf]
      %v260 = vld [vmem:[%s1 + $0xe0] sm:$0xf]
      %v261 = vld [vmem:[%s1 + $0xe4] sm:$0xf]
      %v262 = vld [vmem:[%s1 + $0xe8] sm:$0xf]
      %v263 = vld [vmem:[%s1 + $0xec] sm:$0xf]
      %v264 = vld [vmem:[%s1 + $0xf0] sm:$0xf]
      %v265 = vld [vmem:[%s1 + $0xf4] sm:$0xf]
      %v266 = vld [vmem:[%s1 + $0xf8] sm:$0xf]
      %v267 = vld [vmem:[%s1 + $0xfc] sm:$0xf]
      %v268 = vld [vmem:[%s1 + $0x100] sm:$0xf]
      %v269 = vld [vmem:[%s1 + $0x104] sm:$0xf]
      %v270 = vld [vmem:[%s1 + $0x108] sm:$0xf]
      %v271 = vld [vmem:[%s1 + $0x10c] sm:$0xf]
      %v272 = vld [vmem:[%s1 + $0x110] sm:$0xf]
      %v273 = vld [vmem:[%s1 + $0x114] sm:$0xf]
      %v274 = vld [vmem:[%s1 + $0x118] sm:$0xf]
      %v275 = vld [vmem:[%s1 + $0x11c] sm:$0xf]
      %v276 = vld [vmem:[%s1 + $0x120] sm:$0xf]
      %v277 = vld [vmem:[%s1 + $0x124] sm:$0xf]
      %v278 = vld [vmem:[%s1 + $0x128] sm:$0xf]
      %v279 = vld [vmem:[%s1 + $0x12c] sm:$0xf]
      %v280 = vld [vmem:[%s1 + $0x130] sm:$0xf]
      %v281 = vld [vmem:[%s1 + $0x134] sm:$0xf]
      %v282 = vld [vmem:[%s1 + $0x138] sm:$0xf]
      %v283 = vld [vmem:[%s1 + $0x13c] sm:$0xf]
      %v284 = vld [vmem:[%s1 + $0x140] sm:$0xf]
      %v285 = vld [vmem:[%s1 + $0x144] sm:$0xf]
      %v286 = vld [vmem:[%s1 + $0x148] sm:$0xf]
      %v287 = vld [vmem:[%s1 + $0x14c] sm:$0xf]
      %v288 = vld [vmem:[%s1 + $0x150] sm:$0xf]
      %v289 = vld [vmem:[%s1 + $0x154] sm:$0xf]
      %v290 = vld [vmem:[%s1 + $0x158] sm:$0xf]
      %v291 = vld [vmem:[%s1 + $0x15c] sm:$0xf]
      %v292 = vld [vmem:[%s1 + $0x160] sm:$0xf]
      %v293 = vld [vmem:[%s1 + $0x164] sm:$0xf]
      %v294 = vld [vmem:[%s1 + $0x168] sm:$0xf]
      %v295 = vld [vmem:[%s1 + $0x16c] sm:$0xf]
      %v296 = vld [vmem:[%s1 + $0x170] sm:$0xf]
      %v297 = vld [vmem:[%s1 + $0x174] sm:$0xf]
      %v298 = vld [vmem:[%s1 + $0x178] sm:$0xf]
      %v299 = vld [vmem:[%s1 + $0x17c] sm:$0xf]
      %v300 = vld [vmem:[%s1 + $0x180] sm:$0xf]
      %v301 = vld [vmem:[%s1 + $0x184] sm:$0xf]
      %v302 = vld [vmem:[%s1 + $0x188] sm:$0xf]
      %v303 = vld [vmem:[%s1 + $0x18c] sm:$0xf]
      %v304 = vld [vmem:[%s2] sm:$0x1]
      %v306 = vlaneseq
      %v307 = vshrl.u32 %v306, 7
      %v308 = vsub.s32 0, %v307
      %v309 = vrot.slane %v304, %v308
      %v343 = vunpack.c.l.b16 %v172
      %v344 = vunpack.c.h.b16 %v172
      %v345 = vunpack.c.l.b16 %v173
      %v346 = vunpack.c.h.b16 %v173
      %v347 = vunpack.c.l.b16 %v174
      %v348 = vunpack.c.h.b16 %v174
      %v349 = vunpack.c.l.b16 %v175
      %v350 = vunpack.c.l.b16 %v176
      %v351 = vunpack.c.h.b16 %v176
      %v352 = vunpack.c.l.b16 %v177
      %v353 = vunpack.c.h.b16 %v177
      %v354 = vunpack.c.l.b16 %v178
      %v355 = vunpack.c.h.b16 %v178
      %v356 = vunpack.c.l.b16 %v179
      %v357 = vunpack.c.l.b16 %v180
      %v358 = vunpack.c.h.b16 %v180
      %v359 = vunpack.c.l.b16 %v181
      %v360 = vunpack.c.h.b16 %v181
      %v361 = vunpack.c.l.b16 %v182
      %v362 = vunpack.c.h.b16 %v182
      %v363 = vunpack.c.l.b16 %v183
      %v364 = vunpack.c.l.b16 %v184
      %v365 = vunpack.c.h.b16 %v184
      %v366 = vunpack.c.l.b16 %v185
      %v367 = vunpack.c.h.b16 %v185
      %v368 = vunpack.c.l.b16 %v186
      %v369 = vunpack.c.h.b16 %v186
      %v370 = vunpack.c.l.b16 %v187
      %v371 = vunpack.c.l.b16 %v188
      %v372 = vunpack.c.h.b16 %v188
      %v373 = vunpack.c.l.b16 %v189
      %v374 = vunpack.c.h.b16 %v189
      %v375 = vunpack.c.l.b16 %v190
      %v376 = vunpack.c.h.b16 %v190
      %v377 = vunpack.c.l.b16 %v191
      %v378 = vunpack.c.l.b16 %v192
      %v379 = vunpack.c.h.b16 %v192
      %v380 = vunpack.c.l.b16 %v193
      %v381 = vunpack.c.h.b16 %v193
      %v382 = vunpack.c.l.b16 %v194
      %v383 = vunpack.c.h.b16 %v194
      %v384 = vunpack.c.l.b16 %v195
      %v385 = vunpack.c.l.b16 %v196
      %v386 = vunpack.c.h.b16 %v196
      %v387 = vunpack.c.l.b16 %v197
      %v388 = vunpack.c.h.b16 %v197
      %v389 = vunpack.c.l.b16 %v198
      %v390 = vunpack.c.h.b16 %v198
      %v391 = vunpack.c.l.b16 %v199
      %v392 = vunpack.c.l.b16 %v200
      %v393 = vunpack.c.h.b16 %v200
      %v394 = vunpack.c.l.b16 %v201
      %v395 = vunpack.c.h.b16 %v201
      %v396 = vunpack.c.l.b16 %v202
      %v397 = vunpack.c.h.b16 %v202
      %v398 = vunpack.c.l.b16 %v203
      %v399 = vpack.c.b16 %v350, %v343
      %v400 = vpack.c.b16 %v351, %v344
      %v401 = vpack.c.b16 %v352, %v345
      %v402 = vpack.c.b16 %v353, %v346
      %v403 = vpack.c.b16 %v354, %v347
      %v404 = vpack.c.b16 %v355, %v348
      %v405 = vpack.c.b16 %v356, %v349
      %v406 = vpack.c.b16 %v364, %v357
      %v407 = vpack.c.b16 %v365, %v358
      %v408 = vpack.c.b16 %v366, %v359
      %v409 = vpack.c.b16 %v367, %v360
      %v410 = vpack.c.b16 %v368, %v361
      %v411 = vpack.c.b16 %v369, %v362
      %v412 = vpack.c.b16 %v370, %v363
      %v413 = vpack.c.b16 %v378, %v371
      %v414 = vpack.c.b16 %v379, %v372
      %v415 = vpack.c.b16 %v380, %v373
      %v416 = vpack.c.b16 %v381, %v374
      %v417 = vpack.c.b16 %v382, %v375
      %v418 = vpack.c.b16 %v383, %v376
      %v419 = vpack.c.b16 %v384, %v377
      %v420 = vpack.c.b16 %v392, %v385
      %v421 = vpack.c.b16 %v393, %v386
      %v422 = vpack.c.b16 %v394, %v387
      %v423 = vpack.c.b16 %v395, %v388
      %v424 = vpack.c.b16 %v396, %v389
      %v425 = vpack.c.b16 %v397, %v390
      %v426 = vpack.c.b16 %v398, %v391
      %v551 = vunpack.c.l.b16 %v204
      %v552 = vunpack.c.l.b16 %v205
      %v553 = vunpack.c.l.b16 %v206
      %v554 = vunpack.c.l.b16 %v207
      %v555 = vunpack.c.l.b16 %v208
      %v556 = vunpack.c.l.b16 %v209
      %v557 = vunpack.c.l.b16 %v210
      %v558 = vunpack.c.l.b16 %v211
      %v559 = vunpack.c.l.b16 %v212
      %v560 = vunpack.c.l.b16 %v213
      %v561 = vunpack.c.l.b16 %v214
      %v562 = vunpack.c.l.b16 %v215
      %v563 = vunpack.c.l.b16 %v216
      %v564 = vunpack.c.l.b16 %v217
      %v565 = vunpack.c.l.b16 %v218
      %v566 = vunpack.c.l.b16 %v219
      %v567 = vunpack.c.l.b16 %v220
      %v568 = vunpack.c.l.b16 %v221
      %v569 = vunpack.c.l.b16 %v222
      %v570 = vunpack.c.l.b16 %v223
      %v571 = vunpack.c.l.b16 %v224
      %v572 = vunpack.c.l.b16 %v225
      %v573 = vunpack.c.l.b16 %v226
      %v574 = vunpack.c.l.b16 %v227
      %v575 = vunpack.c.l.b16 %v228
      %v576 = vunpack.c.l.b16 %v229
      %v577 = vunpack.c.l.b16 %v230
      %v578 = vunpack.c.l.b16 %v231
      %v579 = vunpack.c.l.b16 %v232
      %v580 = vunpack.c.l.b16 %v233
      %v581 = vunpack.c.l.b16 %v234
      %v582 = vunpack.c.l.b16 %v235
      %v583 = vunpack.c.l.b16 %v236
      %v584 = vunpack.c.l.b16 %v237
      %v585 = vunpack.c.l.b16 %v238
      %v586 = vunpack.c.l.b16 %v239
      %v587 = vunpack.c.l.b16 %v240
      %v588 = vunpack.c.l.b16 %v241
      %v589 = vunpack.c.l.b16 %v242
      %v590 = vunpack.c.l.b16 %v243
      %v591 = vunpack.c.l.b16 %v244
      %v592 = vunpack.c.l.b16 %v245
      %v593 = vunpack.c.l.b16 %v246
      %v594 = vunpack.c.l.b16 %v247
      %v595 = vunpack.c.l.b16 %v248
      %v596 = vunpack.c.l.b16 %v249
      %v597 = vunpack.c.l.b16 %v250
      %v598 = vunpack.c.l.b16 %v251
      %v599 = vunpack.c.l.b16 %v252
      %v600 = vunpack.c.l.b16 %v253
      %v601 = vunpack.c.l.b16 %v254
      %v602 = vunpack.c.l.b16 %v255
      %v603 = vunpack.c.l.b16 %v256
      %v604 = vunpack.c.l.b16 %v257
      %v605 = vunpack.c.l.b16 %v258
      %v606 = vunpack.c.l.b16 %v259
      %v607 = vunpack.c.l.b16 %v260
      %v608 = vunpack.c.l.b16 %v261
      %v609 = vunpack.c.l.b16 %v262
      %v610 = vunpack.c.l.b16 %v263
      %v611 = vunpack.c.l.b16 %v264
      %v612 = vunpack.c.l.b16 %v265
      %v613 = vunpack.c.l.b16 %v266
      %v614 = vunpack.c.l.b16 %v267
      %v615 = vunpack.c.l.b16 %v268
      %v616 = vunpack.c.l.b16 %v269
      %v617 = vunpack.c.l.b16 %v270
      %v618 = vunpack.c.l.b16 %v271
      %v619 = vunpack.c.l.b16 %v272
      %v620 = vunpack.c.l.b16 %v273
      %v621 = vunpack.c.l.b16 %v274
      %v622 = vunpack.c.l.b16 %v275
      %v623 = vunpack.c.l.b16 %v276
      %v624 = vunpack.c.l.b16 %v277
      %v625 = vunpack.c.l.b16 %v278
      %v626 = vunpack.c.l.b16 %v279
      %v627 = vunpack.c.l.b16 %v280
      %v628 = vunpack.c.l.b16 %v281
      %v629 = vunpack.c.l.b16 %v282
      %v630 = vunpack.c.l.b16 %v283
      %v631 = vunpack.c.l.b16 %v284
      %v632 = vunpack.c.l.b16 %v285
      %v633 = vunpack.c.l.b16 %v286
      %v634 = vunpack.c.l.b16 %v287
      %v635 = vunpack.c.l.b16 %v288
      %v636 = vunpack.c.l.b16 %v289
      %v637 = vunpack.c.l.b16 %v290
      %v638 = vunpack.c.l.b16 %v291
      %v639 = vunpack.c.l.b16 %v292
      %v640 = vunpack.c.l.b16 %v293
      %v641 = vunpack.c.l.b16 %v294
      %v642 = vunpack.c.l.b16 %v295
      %v643 = vunpack.c.l.b16 %v296
      %v644 = vunpack.c.l.b16 %v297
      %v645 = vunpack.c.l.b16 %v298
      %v646 = vunpack.c.l.b16 %v299
      %v647 = vunpack.c.l.b16 %v300
      %v648 = vunpack.c.l.b16 %v301
      %v649 = vunpack.c.l.b16 %v302
      %v650 = vunpack.c.l.b16 %v303
      %v651 = vpack.c.b16 %v552, %v551
      %v652 = vpack.c.b16 %v554, %v553
      %v653 = vpack.c.b16 %v556, %v555
      %v654 = vpack.c.b16 %v558, %v557
      %v655 = vpack.c.b16 %v560, %v559
      %v656 = vpack.c.b16 %v562, %v561
      %v657 = vpack.c.b16 %v564, %v563
      %v658 = vpack.c.b16 %v566, %v565
      %v659 = vpack.c.b16 %v568, %v567
      %v660 = vpack.c.b16 %v570, %v569
      %v661 = vpack.c.b16 %v572, %v571
      %v662 = vpack.c.b16 %v574, %v573
      %v663 = vpack.c.b16 %v576, %v575
      %v664 = vpack.c.b16 %v578, %v577
      %v665 = vpack.c.b16 %v580, %v579
      %v666 = vpack.c.b16 %v582, %v581
      %v667 = vpack.c.b16 %v584, %v583
      %v668 = vpack.c.b16 %v586, %v585
      %v669 = vpack.c.b16 %v588, %v587
      %v670 = vpack.c.b16 %v590, %v589
      %v671 = vpack.c.b16 %v592, %v591
      %v672 = vpack.c.b16 %v594, %v593
      %v673 = vpack.c.b16 %v596, %v595
      %v674 = vpack.c.b16 %v598, %v597
      %v675 = vpack.c.b16 %v600, %v599
      %v676 = vpack.c.b16 %v602, %v601
      %v677 = vpack.c.b16 %v604, %v603
      %v678 = vpack.c.b16 %v606, %v605
      %v679 = vpack.c.b16 %v608, %v607
      %v680 = vpack.c.b16 %v610, %v609
      %v681 = vpack.c.b16 %v612, %v611
      %v682 = vpack.c.b16 %v614, %v613
      %v683 = vpack.c.b16 %v616, %v615
      %v684 = vpack.c.b16 %v618, %v617
      %v685 = vpack.c.b16 %v620, %v619
      %v686 = vpack.c.b16 %v622, %v621
      %v687 = vpack.c.b16 %v624, %v623
      %v688 = vpack.c.b16 %v626, %v625
      %v689 = vpack.c.b16 %v628, %v627
      %v690 = vpack.c.b16 %v630, %v629
      %v691 = vpack.c.b16 %v632, %v631
      %v692 = vpack.c.b16 %v634, %v633
      %v693 = vpack.c.b16 %v636, %v635
      %v694 = vpack.c.b16 %v638, %v637
      %v695 = vpack.c.b16 %v640, %v639
      %v696 = vpack.c.b16 %v642, %v641
      %v697 = vpack.c.b16 %v644, %v643
      %v698 = vpack.c.b16 %v646, %v645
      %v699 = vpack.c.b16 %v648, %v647
      %v700 = vpack.c.b16 %v650, %v649
      %vm751 = vcmask 261120
      %v753 = vsel %vm751, %v405, 0
      %v756 = vsel %vm751, %v412, 0
      %v759 = vsel %vm751, %v419, 0
      %v762 = vsel %vm751, %v426, 0
      %764 = vmatprep.subr.bf16.mxu0 0
      %765 = vmatpush1.bf16.msra.mxu0 %v658
      %766 = vmatprep.subr.bf16.mxu0 0
      %767 = vmatpush1.bf16.msra.mxu0 %v657
      %768 = vmatprep.subr.bf16.mxu0 0
      %769 = vmatpush1.bf16.msra.mxu0 %v656
      %770 = vmatprep.subr.bf16.mxu0 0
      %771 = vmatpush1.bf16.msra.mxu0 %v655
      %772 = vmatprep.subr.bf16.mxu0 0
      %773 = vmatpush1.bf16.msra.mxu0 %v654
      %774 = vmatprep.subr.bf16.mxu0 0
      %775 = vmatpush1.bf16.msra.mxu0 %v653
      %776 = vmatprep.subr.bf16.mxu0 0
      %777 = vmatpush1.bf16.msra.mxu0 %v652
      %778 = vmatprep.subr.bf16.mxu0 0
      %779 = vmatpush1.bf16.msra.mxu0 %v651
      %780 = vmatprep.subr.bf16.mxu0 0
      %781 = vmatpush2.bf16.msra.mxu0 %v666
      %782 = vmatprep.subr.bf16.mxu0 0
      %783 = vmatpush2.bf16.msra.mxu0 %v665
      %784 = vmatprep.subr.bf16.mxu0 0
      %785 = vmatpush2.bf16.msra.mxu0 %v664
      %786 = vmatprep.subr.bf16.mxu0 0
      %787 = vmatpush2.bf16.msra.mxu0 %v663
      %788 = vmatprep.subr.bf16.mxu0 0
      %789 = vmatpush2.bf16.msra.mxu0 %v662
      %790 = vmatprep.subr.bf16.mxu0 0
      %791 = vmatpush2.bf16.msra.mxu0 %v661
      %792 = vmatprep.subr.bf16.mxu0 0
      %793 = vmatpush2.bf16.msra.mxu0 %v660
      %794 = vmatprep.subr.bf16.mxu0 0
      %795 = vmatpush2.bf16.msra.mxu0 %v659
      %796 = vmatprep.mubr.bf16.mxu0 %v400
      %797 = vmatmul.mubr.bf16.gmra.mxu0 %v399
      %v798 = vpop.f32.mrf.mxu0
      %v799 = vadd.f32 %v309, %v798
      %v800 = vpop.f32.mrf.mxu0
      %v801 = vpop.f32.mrf.mxu0
      %v802 = vadd.f32 %v309, %v801
      %v803 = vpop.f32.mrf.mxu0
      %804 = vmatprep.mubr.bf16.mxu0 %v407
      %805 = vmatmul.mubr.bf16.gmra.mxu0 %v406
      %v806 = vpop.f32.mrf.mxu0
      %v807 = vadd.f32 %v309, %v806
      %v808 = vpop.f32.mrf.mxu0
      %v809 = vpop.f32.mrf.mxu0
      %v810 = vadd.f32 %v309, %v809
      %v811 = vpop.f32.mrf.mxu0
      %812 = vmatprep.mubr.bf16.mxu0 %v414
      %813 = vmatmul.mubr.bf16.gmra.mxu0 %v413
      %v814 = vpop.f32.mrf.mxu0
      %v815 = vadd.f32 %v309, %v814
      %v816 = vpop.f32.mrf.mxu0
      %v817 = vpop.f32.mrf.mxu0
      %v818 = vadd.f32 %v309, %v817
      %v819 = vpop.f32.mrf.mxu0
      %820 = vmatprep.mubr.bf16.mxu0 %v421
      %821 = vmatmul.mubr.bf16.gmra.mxu0 %v420
      %v822 = vpop.f32.mrf.mxu0
      %v823 = vadd.f32 %v309, %v822
      %v824 = vpop.f32.mrf.mxu0
      %v825 = vpop.f32.mrf.mxu0
      %v826 = vadd.f32 %v309, %v825
      %v827 = vpop.f32.mrf.mxu0
      %828 = vdwg.mxu0
      %829 = vmatprep.subr.bf16.mxu0 0
      %830 = vmatpush1.bf16.msra.mxu0 %v674
      %831 = vmatprep.subr.bf16.mxu0 0
      %832 = vmatpush1.bf16.msra.mxu0 %v673
      %833 = vmatprep.subr.bf16.mxu0 0
      %834 = vmatpush1.bf16.msra.mxu0 %v672
      %835 = vmatprep.subr.bf16.mxu0 0
      %836 = vmatpush1.bf16.msra.mxu0 %v671
      %837 = vmatprep.subr.bf16.mxu0 0
      %838 = vmatpush1.bf16.msra.mxu0 %v670
      %839 = vmatprep.subr.bf16.mxu0 0
      %840 = vmatpush1.bf16.msra.mxu0 %v669
      %841 = vmatprep.subr.bf16.mxu0 0
      %842 = vmatpush1.bf16.msra.mxu0 %v668
      %843 = vmatprep.subr.bf16.mxu0 0
      %844 = vmatpush1.bf16.msra.mxu0 %v667
      %845 = vmatprep.subr.bf16.mxu0 0
      %846 = vmatpush2.bf16.msra.mxu0 %v682
      %847 = vmatprep.subr.bf16.mxu0 0
      %848 = vmatpush2.bf16.msra.mxu0 %v681
      %849 = vmatprep.subr.bf16.mxu0 0
      %850 = vmatpush2.bf16.msra.mxu0 %v680
      %851 = vmatprep.subr.bf16.mxu0 0
      %852 = vmatpush2.bf16.msra.mxu0 %v679
      %853 = vmatprep.subr.bf16.mxu0 0
      %854 = vmatpush2.bf16.msra.mxu0 %v678
      %855 = vmatprep.subr.bf16.mxu0 0
      %856 = vmatpush2.bf16.msra.mxu0 %v677
      %857 = vmatprep.subr.bf16.mxu0 0
      %858 = vmatpush2.bf16.msra.mxu0 %v676
      %859 = vmatprep.subr.bf16.mxu0 0
      %860 = vmatpush2.bf16.msra.mxu0 %v675
      %861 = vmatprep.mubr.bf16.mxu0 %v402
      %862 = vmatmul.mubr.bf16.gmra.mxu0 %v401
      %v863 = vpop.f32.mrf.mxu0
      %v864 = vadd.f32 %v799, %v863
      %v865 = vpop.f32.mrf.mxu0
      %v866 = vpop.f32.mrf.mxu0
      %v867 = vadd.f32 %v802, %v866
      %v868 = vpop.f32.mrf.mxu0
      %869 = vmatprep.mubr.bf16.mxu0 %v409
      %870 = vmatmul.mubr.bf16.gmra.mxu0 %v408
      %v871 = vpop.f32.mrf.mxu0
      %v872 = vadd.f32 %v807, %v871
      %v873 = vpop.f32.mrf.mxu0
      %v874 = vpop.f32.mrf.mxu0
      %v875 = vadd.f32 %v810, %v874
      %v876 = vpop.f32.mrf.mxu0
      %877 = vmatprep.mubr.bf16.mxu0 %v416
      %878 = vmatmul.mubr.bf16.gmra.mxu0 %v415
      %v879 = vpop.f32.mrf.mxu0
      %v880 = vadd.f32 %v815, %v879
      %v881 = vpop.f32.mrf.mxu0
      %v882 = vpop.f32.mrf.mxu0
      %v883 = vadd.f32 %v818, %v882
      %v884 = vpop.f32.mrf.mxu0
      %885 = vmatprep.mubr.bf16.mxu0 %v423
      %886 = vmatmul.mubr.bf16.gmra.mxu0 %v422
      %v887 = vpop.f32.mrf.mxu0
      %v888 = vadd.f32 %v823, %v887
      %v889 = vpop.f32.mrf.mxu0
      %v890 = vpop.f32.mrf.mxu0
      %v891 = vadd.f32 %v826, %v890
      %v892 = vpop.f32.mrf.mxu0
      %893 = vdwg.mxu0
      %894 = vmatprep.subr.bf16.mxu0 0
      %895 = vmatpush1.bf16.msra.mxu0 %v690
      %896 = vmatprep.subr.bf16.mxu0 0
      %897 = vmatpush1.bf16.msra.mxu0 %v689
      %898 = vmatprep.subr.bf16.mxu0 0
      %899 = vmatpush1.bf16.msra.mxu0 %v688
      %900 = vmatprep.subr.bf16.mxu0 0
      %901 = vmatpush1.bf16.msra.mxu0 %v687
      %902 = vmatprep.subr.bf16.mxu0 0
      %903 = vmatpush1.bf16.msra.mxu0 %v686
      %904 = vmatprep.subr.bf16.mxu0 0
      %905 = vmatpush1.bf16.msra.mxu0 %v685
      %906 = vmatprep.subr.bf16.mxu0 0
      %907 = vmatpush1.bf16.msra.mxu0 %v684
      %908 = vmatprep.subr.bf16.mxu0 0
      %909 = vmatpush1.bf16.msra.mxu0 %v683
      %910 = vmatprep.subr.bf16.mxu0 0
      %911 = vmatpush2.bf16.msra.mxu0 %v698
      %912 = vmatprep.subr.bf16.mxu0 0
      %913 = vmatpush2.bf16.msra.mxu0 %v697
      %914 = vmatprep.subr.bf16.mxu0 0
      %915 = vmatpush2.bf16.msra.mxu0 %v696
      %916 = vmatprep.subr.bf16.mxu0 0
      %917 = vmatpush2.bf16.msra.mxu0 %v695
      %918 = vmatprep.subr.bf16.mxu0 0
      %919 = vmatpush2.bf16.msra.mxu0 %v694
      %920 = vmatprep.subr.bf16.mxu0 0
      %921 = vmatpush2.bf16.msra.mxu0 %v693
      %922 = vmatprep.subr.bf16.mxu0 0
      %923 = vmatpush2.bf16.msra.mxu0 %v692
      %924 = vmatprep.subr.bf16.mxu0 0
      %925 = vmatpush2.bf16.msra.mxu0 %v691
      %926 = vmatprep.mubr.bf16.mxu0 %v404
      %927 = vmatmul.mubr.bf16.gmra.mxu0 %v403
      %v928 = vpop.f32.mrf.mxu0
      %v929 = vadd.f32 %v864, %v928
      %v930 = vpop.f32.mrf.mxu0
      %v931 = vpop.f32.mrf.mxu0
      %v932 = vadd.f32 %v867, %v931
      %v933 = vpop.f32.mrf.mxu0
      %934 = vmatprep.mubr.bf16.mxu0 %v411
      %935 = vmatmul.mubr.bf16.gmra.mxu0 %v410
      %v936 = vpop.f32.mrf.mxu0
      %v937 = vadd.f32 %v872, %v936
      %v938 = vpop.f32.mrf.mxu0
      %v939 = vpop.f32.mrf.mxu0
      %v940 = vadd.f32 %v875, %v939
      %v941 = vpop.f32.mrf.mxu0
      %942 = vmatprep.mubr.bf16.mxu0 %v418
      %943 = vmatmul.mubr.bf16.gmra.mxu0 %v417
      %v944 = vpop.f32.mrf.mxu0
      %v945 = vadd.f32 %v880, %v944
      %v946 = vpop.f32.mrf.mxu0
      %v947 = vpop.f32.mrf.mxu0
      %v948 = vadd.f32 %v883, %v947
      %v949 = vpop.f32.mrf.mxu0
      %950 = vmatprep.mubr.bf16.mxu0 %v425
      %951 = vmatmul.mubr.bf16.gmra.mxu0 %v424
      %v952 = vpop.f32.mrf.mxu0
      %v953 = vadd.f32 %v888, %v952
      %v954 = vpop.f32.mrf.mxu0
      %v955 = vpop.f32.mrf.mxu0
      %v956 = vadd.f32 %v891, %v955
      %v957 = vpop.f32.mrf.mxu0
      %958 = vdwg.mxu0
      %959 = vmatprep.subr.bf16.mxu0 0
      %960 = vmatpush1.bf16.msra.mxu0 0
      %961 = vmatprep.subr.bf16.mxu0 0
      %962 = vmatpush1.bf16.msra.mxu0 0
      %963 = vmatprep.subr.bf16.mxu0 0
      %964 = vmatpush1.bf16.msra.mxu0 0
      %965 = vmatprep.subr.bf16.mxu0 0
      %966 = vmatpush1.bf16.msra.mxu0 0
      %967 = vmatprep.subr.bf16.mxu0 0
      %968 = vmatpush1.bf16.msra.mxu0 0
      %969 = vmatprep.subr.bf16.mxu0 0
      %970 = vmatpush1.bf16.msra.mxu0 0
      %971 = vmatprep.subr.bf16.mxu0 0
      %972 = vmatpush1.bf16.msra.mxu0 %v700
      %973 = vmatprep.subr.bf16.mxu0 0
      %974 = vmatpush1.bf16.msra.mxu0 %v699
      %975 = vmatprep.subr.bf16.mxu0 0
      %976 = vmatpush2.bf16.msra.mxu0 0
      %977 = vmatprep.subr.bf16.mxu0 0
      %978 = vmatpush2.bf16.msra.mxu0 0
      %979 = vmatprep.subr.bf16.mxu0 0
      %980 = vmatpush2.bf16.msra.mxu0 0
      %981 = vmatprep.subr.bf16.mxu0 0
      %982 = vmatpush2.bf16.msra.mxu0 0
      %983 = vmatprep.subr.bf16.mxu0 0
      %984 = vmatpush2.bf16.msra.mxu0 0
      %985 = vmatprep.subr.bf16.mxu0 0
      %986 = vmatpush2.bf16.msra.mxu0 0
      %987 = vmatprep.subr.bf16.mxu0 0
      %988 = vmatpush2.bf16.msra.mxu0 0
      %989 = vmatprep.subr.bf16.mxu0 0
      %990 = vmatpush2.bf16.msra.mxu0 0
      %991 = vmatprep.mubr.bf16.mxu0 0
      %992 = vmatmul.mubr.bf16.gmra.mxu0 %v753
      %v993 = vpop.f32.mrf.mxu0
      %v994 = vadd.f32 %v929, %v993
      %v995 = vpop.f32.mrf.mxu0
      %v996 = vpop.f32.mrf.mxu0
      %v997 = vadd.f32 %v932, %v996
      %v998 = vpop.f32.mrf.mxu0
      %999 = vmatprep.mubr.bf16.mxu0 0
      %1000 = vmatmul.mubr.bf16.gmra.mxu0 %v756
      %v1001 = vpop.f32.mrf.mxu0
      %v1002 = vadd.f32 %v937, %v1001
      %v1003 = vpop.f32.mrf.mxu0
      %v1004 = vpop.f32.mrf.mxu0
      %v1005 = vadd.f32 %v940, %v1004
      %v1006 = vpop.f32.mrf.mxu0
      %1007 = vmatprep.mubr.bf16.mxu0 0
      %1008 = vmatmul.mubr.bf16.gmra.mxu0 %v759
      %v1009 = vpop.f32.mrf.mxu0
      %v1010 = vadd.f32 %v945, %v1009
      %v1011 = vpop.f32.mrf.mxu0
      %v1012 = vpop.f32.mrf.mxu0
      %v1013 = vadd.f32 %v948, %v1012
      %v1014 = vpop.f32.mrf.mxu0
      %1015 = vmatprep.mubr.bf16.mxu0 0
      %1016 = vmatmul.mubr.bf16.gmra.mxu0 %v762
      %v1017 = vpop.f32.mrf.mxu0
      %v1018 = vadd.f32 %v953, %v1017
      %v1019 = vpop.f32.mrf.mxu0
      %v1020 = vpop.f32.mrf.mxu0
      %v1021 = vadd.f32 %v956, %v1020
      %v1022 = vpop.f32.mrf.mxu0
      %1023 = vdwg.mxu0
      %v1024 = vmax.f32 %v994, 0.0
      %v1025 = vmax.f32 %v997, 0.0
      %v1026 = vmax.f32 %v1002, 0.0
      %v1027 = vmax.f32 %v1005, 0.0
      %v1028 = vmax.f32 %v1010, 0.0
      %v1029 = vmax.f32 %v1013, 0.0
      %v1030 = vmax.f32 %v1018, 0.0
      %v1031 = vmax.f32 %v1021, 0.0
      %v1032 = vmax.f32 %v1024, %v1026
      %v1033 = vmax.f32 %v1025, %v1027
      %v1034 = vmax.f32 %v1028, %v1030
      %v1035 = vmax.f32 %v1029, %v1031
      %v1036 = vmax.f32 %v1032, %v1034
      %v1037 = vmax.f32 %v1033, %v1035
      %v1038 = vpack.c.bf16 %v1037, %v1036
      %v1040 = vunpack.c.l.b16 %v1038
      %v1041 = vunpack.c.h.b16 %v1038
      %v1042 = vpack.c.b16 %v1040, %v1040
      %v1043 = vpack.c.b16 %v1041, %v1041
      %vm1046 = vcmask 519168
      %1047 = vst.msk [vmem:[%s170] sm:$0xf] %vm1046, %v1042
      %1048 = vst.msk [vmem:[%s170 + $0x4] sm:$0xf] %vm1046, %v1043
      %p1049 = scmp.lt.s32.totalorder %s14, 1
      %s1050 = scalar_select %p1049, %s14, 1
      %s1051 = smul.addr %s1050, 2
      %s1052 = smul.addr %s1051, 4
      %s1053 = scalar_lea.vmem %s3, %s1052
      // Predicated region
      $region33: #{forward.4} parent=31 // pred_check
        %p1054 = pneg %p100
      $region34: #{forward.4} parent=31 // pred_check_branch
        %1056 = sbr.rel (%p1054) target = $region36
      $region35: #{forward.4} parent=31 // pred_region
        _
      $region36: #{forward.4} parent=31 // pred_fallthru
        _
    $region32: #{forward.4} parent=5 // pred_fallthru
      _
    %p1057 = scmp.le.s32.totalorder 2, %s9
    // Predicated region
    $region37: #{forward.4} parent=5 // pred_check
      %p1058 = pneg %p1057
    $region38: #{forward.4} parent=5 // pred_check_branch
      %1060 = sbr.rel (%p1058) target = $region40
    $region39: #{forward.4} parent=5 // pred_region
      %s1061 = ssub.s32 %s9, 2
      // Predicated region
      $region41: #{forward.4} parent=39 // pred_check
        %p1062 = pneg %p106
      $region42: #{forward.4} parent=39 // pred_check_branch
        %1064 = sbr.rel (%p1062) target = $region44
      $region43: #{forward.4} parent=39 // pred_region
        %p1065 = scmp.lt.s32.totalorder %s15, 1
        %s1066 = scalar_select %p1065, %s15, 1
        %s1067 = smul.addr %s1066, 2
        %s1068 = smul.addr %s1067, 4
        %s1069 = scalar_lea.vmem %s3, %s1068
      $region44: #{forward.4} parent=39 // pred_fallthru
        _
    $region40: #{forward.4} parent=5 // pred_fallthru
      _
  $region6: #{forward.4} parent=0 // loop_footer
    %s13 = sadd.s32 1, %s9
  $region7: #{forward.4} parent=0 // loop_footer_branch
    %8 = sbr.rel target = $region3
  $region8: #{forward.4} parent=0 // loop_exit
    _

// kernel: forward.5
$region0: #{forward.5}
  #allocation0 [shape = 'u32[]', space=smem, size = 0x4, offset = 0x4, fixed_abs, tag = 'smem constant byte address 0x4 - core index']
  #allocation1 [shape = 'u32[144,128]{1,0:T(1,128)}', space=vmem, size = 0x12000, scoped, tag = 'internal scratch']
  %s0 = inlined_call_operand.vmem [shape: bf16[2,1024], index: 0, kind: input, shape index: {}]
  %s1 = inlined_call_operand.vmem [shape: bf16[1024,10], index: 1, kind: input, shape index: {}]
  %s2 = inlined_call_operand.vmem [shape: f32[1,10], index: 2, kind: input, shape index: {}]
  %s3 = inlined_call_operand.hbm [shape: f32[2,10], index: 3, kind: output, shape index: {}]
  %s4 = sld [smem:[#allocation0]]
  $region22: #{forward.5} parent=0
    _
  %s6 = ssub.s32 1, %s4
  %s7 = scalar_select 0, %s6, %s4
  $region1: #{forward.5} parent=0
    #allocation2 [shape = 'u8[1024]{0}', space=vmem, size = 0x400, scoped, tag = 'output window, operand 0, single buffered']
    #allocation3 [shape = 's32[1]{0}', space=sflag, size = 0x4, scoped, tag = 'scoped memory for forward.5']
    %8 = vsyncpa [#allocation3], 0
    // Predicated region
    $region2: #{forward.5} parent=1 // pred_check
      _
    $region3: #{forward.5} parent=1 // pred_check_branch
      %10 = sbr.rel (0) target = $region5
    $region4: #{forward.5} parent=1 // pred_region
      _
    $region5: #{forward.5} parent=1 // pred_fallthru
      _
    // Predicated region
    $region6: #{forward.5} parent=1 // pred_check
      _
    $region7: #{forward.5} parent=1 // pred_check_branch
      %12 = sbr.rel (0) target = $region9
    $region8: #{forward.5} parent=1 // pred_region
      _
    $region9: #{forward.5} parent=1 // pred_fallthru
      _
    // Predicated region
    $region10: #{forward.5} parent=1 // pred_check
      _
    $region11: #{forward.5} parent=1 // pred_check_branch
      %14 = sbr.rel (0) target = $region13
    $region12: #{forward.5} parent=1 // pred_region
      _
    $region13: #{forward.5} parent=1 // pred_fallthru
      _
    %v16 = vld [vmem:[%s0] sm:$0xff]
    %v17 = vld [vmem:[%s1] sm:$0xf]
    %v18 = vld [vmem:[%s1 + $0x4] sm:$0xf]
    %v19 = vld [vmem:[%s1 + $0x8] sm:$0xf]
    %v20 = vld [vmem:[%s1 + $0xc] sm:$0xf]
    %v21 = vld [vmem:[%s1 + $0x10] sm:$0xf]
    %v22 = vld [vmem:[%s1 + $0x14] sm:$0xf]
    %v23 = vld [vmem:[%s1 + $0x18] sm:$0xf]
    %v24 = vld [vmem:[%s1 + $0x1c] sm:$0xf]
    %v25 = vld [vmem:[%s1 + $0x20] sm:$0xf]
    %v26 = vld [vmem:[%s1 + $0x24] sm:$0xf]
    %v27 = vld [vmem:[%s1 + $0x28] sm:$0xf]
    %v28 = vld [vmem:[%s1 + $0x2c] sm:$0xf]
    %v29 = vld [vmem:[%s1 + $0x30] sm:$0xf]
    %v30 = vld [vmem:[%s1 + $0x34] sm:$0xf]
    %v31 = vld [vmem:[%s1 + $0x38] sm:$0xf]
    %v32 = vld [vmem:[%s1 + $0x3c] sm:$0xf]
    %v33 = vld [vmem:[%s1 + $0x40] sm:$0xf]
    %v34 = vld [vmem:[%s1 + $0x44] sm:$0xf]
    %v35 = vld [vmem:[%s1 + $0x48] sm:$0xf]
    %v36 = vld [vmem:[%s1 + $0x4c] sm:$0xf]
    %v37 = vld [vmem:[%s1 + $0x50] sm:$0xf]
    %v38 = vld [vmem:[%s1 + $0x54] sm:$0xf]
    %v39 = vld [vmem:[%s1 + $0x58] sm:$0xf]
    %v40 = vld [vmem:[%s1 + $0x5c] sm:$0xf]
    %v41 = vld [vmem:[%s1 + $0x60] sm:$0xf]
    %v42 = vld [vmem:[%s1 + $0x64] sm:$0xf]
    %v43 = vld [vmem:[%s1 + $0x68] sm:$0xf]
    %v44 = vld [vmem:[%s1 + $0x6c] sm:$0xf]
    %v45 = vld [vmem:[%s1 + $0x70] sm:$0xf]
    %v46 = vld [vmem:[%s1 + $0x74] sm:$0xf]
    %v47 = vld [vmem:[%s1 + $0x78] sm:$0xf]
    %v48 = vld [vmem:[%s1 + $0x7c] sm:$0xf]
    %v49 = vld [vmem:[%s1 + $0x80] sm:$0xf]
    %v50 = vld [vmem:[%s1 + $0x84] sm:$0xf]
    %v51 = vld [vmem:[%s1 + $0x88] sm:$0xf]
    %v52 = vld [vmem:[%s1 + $0x8c] sm:$0xf]
    %v53 = vld [vmem:[%s1 + $0x90] sm:$0xf]
    %v54 = vld [vmem:[%s1 + $0x94] sm:$0xf]
    %v55 = vld [vmem:[%s1 + $0x98] sm:$0xf]
    %v56 = vld [vmem:[%s1 + $0x9c] sm:$0xf]
    %v57 = vld [vmem:[%s1 + $0xa0] sm:$0xf]
    %v58 = vld [vmem:[%s1 + $0xa4] sm:$0xf]
    %v59 = vld [vmem:[%s1 + $0xa8] sm:$0xf]
    %v60 = vld [vmem:[%s1 + $0xac] sm:$0xf]
    %v61 = vld [vmem:[%s1 + $0xb0] sm:$0xf]
    %v62 = vld [vmem:[%s1 + $0xb4] sm:$0xf]
    %v63 = vld [vmem:[%s1 + $0xb8] sm:$0xf]
    %v64 = vld [vmem:[%s1 + $0xbc] sm:$0xf]
    %v65 = vld [vmem:[%s1 + $0xc0] sm:$0xf]
    %v66 = vld [vmem:[%s1 + $0xc4] sm:$0xf]
    %v67 = vld [vmem:[%s1 + $0xc8] sm:$0xf]
    %v68 = vld [vmem:[%s1 + $0xcc] sm:$0xf]
    %v69 = vld [vmem:[%s1 + $0xd0] sm:$0xf]
    %v70 = vld [vmem:[%s1 + $0xd4] sm:$0xf]
    %v71 = vld [vmem:[%s1 + $0xd8] sm:$0xf]
    %v72 = vld [vmem:[%s1 + $0xdc] sm:$0xf]
    %v73 = vld [vmem:[%s1 + $0xe0] sm:$0xf]
    %v74 = vld [vmem:[%s1 + $0xe4] sm:$0xf]
    %v75 = vld [vmem:[%s1 + $0xe8] sm:$0xf]
    %v76 = vld [vmem:[%s1 + $0xec] sm:$0xf]
    %v77 = vld [vmem:[%s1 + $0xf0] sm:$0xf]
    %v78 = vld [vmem:[%s1 + $0xf4] sm:$0xf]
    %v79 = vld [vmem:[%s1 + $0xf8] sm:$0xf]
    %v80 = vld [vmem:[%s1 + $0xfc] sm:$0xf]
    %v81 = vld [vmem:[%s1 + $0x100] sm:$0xf]
    %v82 = vld [vmem:[%s1 + $0x104] sm:$0xf]
    %v83 = vld [vmem:[%s1 + $0x108] sm:$0xf]
    %v84 = vld [vmem:[%s1 + $0x10c] sm:$0xf]
    %v85 = vld [vmem:[%s1 + $0x110] sm:$0xf]
    %v86 = vld [vmem:[%s1 + $0x114] sm:$0xf]
    %v87 = vld [vmem:[%s1 + $0x118] sm:$0xf]
    %v88 = vld [vmem:[%s1 + $0x11c] sm:$0xf]
    %v89 = vld [vmem:[%s1 + $0x120] sm:$0xf]
    %v90 = vld [vmem:[%s1 + $0x124] sm:$0xf]
    %v91 = vld [vmem:[%s1 + $0x128] sm:$0xf]
    %v92 = vld [vmem:[%s1 + $0x12c] sm:$0xf]
    %v93 = vld [vmem:[%s1 + $0x130] sm:$0xf]
    %v94 = vld [vmem:[%s1 + $0x134] sm:$0xf]
    %v95 = vld [vmem:[%s1 + $0x138] sm:$0xf]
    %v96 = vld [vmem:[%s1 + $0x13c] sm:$0xf]
    %v97 = vld [vmem:[%s1 + $0x140] sm:$0xf]
    %v98 = vld [vmem:[%s1 + $0x144] sm:$0xf]
    %v99 = vld [vmem:[%s1 + $0x148] sm:$0xf]
    %v100 = vld [vmem:[%s1 + $0x14c] sm:$0xf]
    %v101 = vld [vmem:[%s1 + $0x150] sm:$0xf]
    %v102 = vld [vmem:[%s1 + $0x154] sm:$0xf]
    %v103 = vld [vmem:[%s1 + $0x158] sm:$0xf]
    %v104 = vld [vmem:[%s1 + $0x15c] sm:$0xf]
    %v105 = vld [vmem:[%s1 + $0x160] sm:$0xf]
    %v106 = vld [vmem:[%s1 + $0x164] sm:$0xf]
    %v107 = vld [vmem:[%s1 + $0x168] sm:$0xf]
    %v108 = vld [vmem:[%s1 + $0x16c] sm:$0xf]
    %v109 = vld [vmem:[%s1 + $0x170] sm:$0xf]
    %v110 = vld [vmem:[%s1 + $0x174] sm:$0xf]
    %v111 = vld [vmem:[%s1 + $0x178] sm:$0xf]
    %v112 = vld [vmem:[%s1 + $0x17c] sm:$0xf]
    %v113 = vld [vmem:[%s1 + $0x180] sm:$0xf]
    %v114 = vld [vmem:[%s1 + $0x184] sm:$0xf]
    %v115 = vld [vmem:[%s1 + $0x188] sm:$0xf]
    %v116 = vld [vmem:[%s1 + $0x18c] sm:$0xf]
    %v117 = vld [vmem:[%s1 + $0x190] sm:$0xf]
    %v118 = vld [vmem:[%s1 + $0x194] sm:$0xf]
    %v119 = vld [vmem:[%s1 + $0x198] sm:$0xf]
    %v120 = vld [vmem:[%s1 + $0x19c] sm:$0xf]
    %v121 = vld [vmem:[%s1 + $0x1a0] sm:$0xf]
    %v122 = vld [vmem:[%s1 + $0x1a4] sm:$0xf]
    %v123 = vld [vmem:[%s1 + $0x1a8] sm:$0xf]
    %v124 = vld [vmem:[%s1 + $0x1ac] sm:$0xf]
    %v125 = vld [vmem:[%s1 + $0x1b0] sm:$0xf]
    %v126 = vld [vmem:[%s1 + $0x1b4] sm:$0xf]
    %v127 = vld [vmem:[%s1 + $0x1b8] sm:$0xf]
    %v128 = vld [vmem:[%s1 + $0x1bc] sm:$0xf]
    %v129 = vld [vmem:[%s1 + $0x1c0] sm:$0xf]
    %v130 = vld [vmem:[%s1 + $0x1c4] sm:$0xf]
    %v131 = vld [vmem:[%s1 + $0x1c8] sm:$0xf]
    %v132 = vld [vmem:[%s1 + $0x1cc] sm:$0xf]
    %v133 = vld [vmem:[%s1 + $0x1d0] sm:$0xf]
    %v134 = vld [vmem:[%s1 + $0x1d4] sm:$0xf]
    %v135 = vld [vmem:[%s1 + $0x1d8] sm:$0xf]
    %v136 = vld [vmem:[%s1 + $0x1dc] sm:$0xf]
    %v137 = vld [vmem:[%s1 + $0x1e0] sm:$0xf]
    %v138 = vld [vmem:[%s1 + $0x1e4] sm:$0xf]
    %v139 = vld [vmem:[%s1 + $0x1e8] sm:$0xf]
    %v140 = vld [vmem:[%s1 + $0x1ec] sm:$0xf]
    %v141 = vld [vmem:[%s1 + $0x1f0] sm:$0xf]
    %v142 = vld [vmem:[%s1 + $0x1f4] sm:$0xf]
    %v143 = vld [vmem:[%s1 + $0x1f8] sm:$0xf]
    %v144 = vld [vmem:[%s1 + $0x1fc] sm:$0xf]
    %v145 = vld [vmem:[%s2] sm:$0x1]
    %v147 = vlaneseq
    %v148 = vshrl.u32 %v147, 7
    %v149 = vsub.s32 0, %v148
    %v150 = vrot.slane %v145, %v149
    %v153 = vcombine.high %v16, %v16
    %v155 = vunpack.c.l.s4 1966171168
    %v156 = vunpack.c.0.s8 %v155
    %v157 = vlaneseq
    %v158 = vshrl.u32 %v157, 7
    %v159 = vsub.s32 %v156, %v158
    %v160 = vrot.slane %v16, %v159
    %v162 = vunpack.c.l.s4 1966171168
    %v163 = vunpack.c.0.s8 %v162
    %v164 = vlaneseq
    %v165 = vshrl.u32 %v164, 7
    %v166 = vsub.s32 %v163, %v165
    %v167 = vrot.slane %v153, %v166
    %v168 = vcombine.high %v160, %v160
    %v169 = vcombine.high %v167, %v167
    %v171 = vunpack.c.l.s4 1966171168
    %v172 = vunpack.c.0.s8 %v171
    %v173 = vlaneseq
    %v174 = vshrl.u32 %v173, 7
    %v175 = vsub.s32 %v172, %v174
    %v176 = vrot.slane %v160, %v175
    %v178 = vunpack.c.l.s4 1966171168
    %v179 = vunpack.c.0.s8 %v178
    %v180 = vlaneseq
    %v181 = vshrl.u32 %v180, 7
    %v182 = vsub.s32 %v179, %v181
    %v183 = vrot.slane %v167, %v182
    %v185 = vunpack.c.l.s4 1966171168
    %v186 = vunpack.c.0.s8 %v185
    %v187 = vlaneseq
    %v188 = vshrl.u32 %v187, 7
    %v189 = vsub.s32 %v186, %v188
    %v190 = vrot.slane %v168, %v189
    %v192 = vunpack.c.l.s4 1966171168
    %v193 = vunpack.c.0.s8 %v192
    %v194 = vlaneseq
    %v195 = vshrl.u32 %v194, 7
    %v196 = vsub.s32 %v193, %v195
    %v197 = vrot.slane %v169, %v196
    %v198 = vcombine.high %v176, %v176
    %v199 = vcombine.high %v183, %v183
    %v200 = vcombine.high %v190, %v190
    %v201 = vcombine.high %v197, %v197
    %v338 = vunpack.c.l.b16 %v17
    %v339 = vunpack.c.l.b16 %v18
    %v340 = vunpack.c.l.b16 %v19
    %v341 = vunpack.c.l.b16 %v20
    %v342 = vunpack.c.l.b16 %v21
    %v343 = vunpack.c.l.b16 %v22
    %v344 = vunpack.c.l.b16 %v23
    %v345 = vunpack.c.l.b16 %v24
    %v346 = vunpack.c.l.b16 %v25
    %v347 = vunpack.c.l.b16 %v26
    %v348 = vunpack.c.l.b16 %v27
    %v349 = vunpack.c.l.b16 %v28
    %v350 = vunpack.c.l.b16 %v29
    %v351 = vunpack.c.l.b16 %v30
    %v352 = vunpack.c.l.b16 %v31
    %v353 = vunpack.c.l.b16 %v32
    %v354 = vunpack.c.l.b16 %v33
    %v355 = vunpack.c.l.b16 %v34
    %v356 = vunpack.c.l.b16 %v35
    %v357 = vunpack.c.l.b16 %v36
    %v358 = vunpack.c.l.b16 %v37
    %v359 = vunpack.c.l.b16 %v38
    %v360 = vunpack.c.l.b16 %v39
    %v361 = vunpack.c.l.b16 %v40
    %v362 = vunpack.c.l.b16 %v41
    %v363 = vunpack.c.l.b16 %v42
    %v364 = vunpack.c.l.b16 %v43
    %v365 = vunpack.c.l.b16 %v44
    %v366 = vunpack.c.l.b16 %v45
    %v367 = vunpack.c.l.b16 %v46
    %v368 = vunpack.c.l.b16 %v47
    %v369 = vunpack.c.l.b16 %v48
    %v370 = vunpack.c.l.b16 %v49
    %v371 = vunpack.c.l.b16 %v50
    %v372 = vunpack.c.l.b16 %v51
    %v373 = vunpack.c.l.b16 %v52
    %v374 = vunpack.c.l.b16 %v53
    %v375 = vunpack.c.l.b16 %v54
    %v376 = vunpack.c.l.b16 %v55
    %v377 = vunpack.c.l.b16 %v56
    %v378 = vunpack.c.l.b16 %v57
    %v379 = vunpack.c.l.b16 %v58
    %v380 = vunpack.c.l.b16 %v59
    %v381 = vunpack.c.l.b16 %v60
    %v382 = vunpack.c.l.b16 %v61
    %v383 = vunpack.c.l.b16 %v62
    %v384 = vunpack.c.l.b16 %v63
    %v385 = vunpack.c.l.b16 %v64
    %v386 = vunpack.c.l.b16 %v65
    %v387 = vunpack.c.l.b16 %v66
    %v388 = vunpack.c.l.b16 %v67
    %v389 = vunpack.c.l.b16 %v68
    %v390 = vunpack.c.l.b16 %v69
    %v391 = vunpack.c.l.b16 %v70
    %v392 = vunpack.c.l.b16 %v71
    %v393 = vunpack.c.l.b16 %v72
    %v394 = vunpack.c.l.b16 %v73
    %v395 = vunpack.c.l.b16 %v74
    %v396 = vunpack.c.l.b16 %v75
    %v397 = vunpack.c.l.b16 %v76
    %v398 = vunpack.c.l.b16 %v77
    %v399 = vunpack.c.l.b16 %v78
    %v400 = vunpack.c.l.b16 %v79
    %v401 = vunpack.c.l.b16 %v80
    %v402 = vunpack.c.l.b16 %v81
    %v403 = vunpack.c.l.b16 %v82
    %v404 = vunpack.c.l.b16 %v83
    %v405 = vunpack.c.l.b16 %v84
    %v406 = vunpack.c.l.b16 %v85
    %v407 = vunpack.c.l.b16 %v86
    %v408 = vunpack.c.l.b16 %v87
    %v409 = vunpack.c.l.b16 %v88
    %v410 = vunpack.c.l.b16 %v89
    %v411 = vunpack.c.l.b16 %v90
    %v412 = vunpack.c.l.b16 %v91
    %v413 = vunpack.c.l.b16 %v92
    %v414 = vunpack.c.l.b16 %v93
    %v415 = vunpack.c.l.b16 %v94
    %v416 = vunpack.c.l.b16 %v95
    %v417 = vunpack.c.l.b16 %v96
    %v418 = vunpack.c.l.b16 %v97
    %v419 = vunpack.c.l.b16 %v98
    %v420 = vunpack.c.l.b16 %v99
    %v421 = vunpack.c.l.b16 %v100
    %v422 = vunpack.c.l.b16 %v101
    %v423 = vunpack.c.l.b16 %v102
    %v424 = vunpack.c.l.b16 %v103
    %v425 = vunpack.c.l.b16 %v104
    %v426 = vunpack.c.l.b16 %v105
    %v427 = vunpack.c.l.b16 %v106
    %v428 = vunpack.c.l.b16 %v107
    %v429 = vunpack.c.l.b16 %v108
    %v430 = vunpack.c.l.b16 %v109
    %v431 = vunpack.c.l.b16 %v110
    %v432 = vunpack.c.l.b16 %v111
    %v433 = vunpack.c.l.b16 %v112
    %v434 = vunpack.c.l.b16 %v113
    %v435 = vunpack.c.l.b16 %v114
    %v436 = vunpack.c.l.b16 %v115
    %v437 = vunpack.c.l.b16 %v116
    %v438 = vunpack.c.l.b16 %v117
    %v439 = vunpack.c.l.b16 %v118
    %v440 = vunpack.c.l.b16 %v119
    %v441 = vunpack.c.l.b16 %v120
    %v442 = vunpack.c.l.b16 %v121
    %v443 = vunpack.c.l.b16 %v122
    %v444 = vunpack.c.l.b16 %v123
    %v445 = vunpack.c.l.b16 %v124
    %v446 = vunpack.c.l.b16 %v125
    %v447 = vunpack.c.l.b16 %v126
    %v448 = vunpack.c.l.b16 %v127
    %v449 = vunpack.c.l.b16 %v128
    %v450 = vunpack.c.l.b16 %v129
    %v451 = vunpack.c.l.b16 %v130
    %v452 = vunpack.c.l.b16 %v131
    %v453 = vunpack.c.l.b16 %v132
    %v454 = vunpack.c.l.b16 %v133
    %v455 = vunpack.c.l.b16 %v134
    %v456 = vunpack.c.l.b16 %v135
    %v457 = vunpack.c.l.b16 %v136
    %v458 = vunpack.c.l.b16 %v137
    %v459 = vunpack.c.l.b16 %v138
    %v460 = vunpack.c.l.b16 %v139
    %v461 = vunpack.c.l.b16 %v140
    %v462 = vunpack.c.l.b16 %v141
    %v463 = vunpack.c.l.b16 %v142
    %v464 = vunpack.c.l.b16 %v143
    %v465 = vunpack.c.l.b16 %v144
    %v466 = vpack.c.b16 %v339, %v338
    %v467 = vpack.c.b16 %v341, %v340
    %v468 = vpack.c.b16 %v343, %v342
    %v469 = vpack.c.b16 %v345, %v344
    %v470 = vpack.c.b16 %v347, %v346
    %v471 = vpack.c.b16 %v349, %v348
    %v472 = vpack.c.b16 %v351, %v350
    %v473 = vpack.c.b16 %v353, %v352
    %v474 = vpack.c.b16 %v355, %v354
    %v475 = vpack.c.b16 %v357, %v356
    %v476 = vpack.c.b16 %v359, %v358
    %v477 = vpack.c.b16 %v361, %v360
    %v478 = vpack.c.b16 %v363, %v362
    %v479 = vpack.c.b16 %v365, %v364
    %v480 = vpack.c.b16 %v367, %v366
    %v481 = vpack.c.b16 %v369, %v368
    %v482 = vpack.c.b16 %v371, %v370
    %v483 = vpack.c.b16 %v373, %v372
    %v484 = vpack.c.b16 %v375, %v374
    %v485 = vpack.c.b16 %v377, %v376
    %v486 = vpack.c.b16 %v379, %v378
    %v487 = vpack.c.b16 %v381, %v380
    %v488 = vpack.c.b16 %v383, %v382
    %v489 = vpack.c.b16 %v385, %v384
    %v490 = vpack.c.b16 %v387, %v386
    %v491 = vpack.c.b16 %v389, %v388
    %v492 = vpack.c.b16 %v391, %v390
    %v493 = vpack.c.b16 %v393, %v392
    %v494 = vpack.c.b16 %v395, %v394
    %v495 = vpack.c.b16 %v397, %v396
    %v496 = vpack.c.b16 %v399, %v398
    %v497 = vpack.c.b16 %v401, %v400
    %v498 = vpack.c.b16 %v403, %v402
    %v499 = vpack.c.b16 %v405, %v404
    %v500 = vpack.c.b16 %v407, %v406
    %v501 = vpack.c.b16 %v409, %v408
    %v502 = vpack.c.b16 %v411, %v410
    %v503 = vpack.c.b16 %v413, %v412
    %v504 = vpack.c.b16 %v415, %v414
    %v505 = vpack.c.b16 %v417, %v416
    %v506 = vpack.c.b16 %v419, %v418
    %v507 = vpack.c.b16 %v421, %v420
    %v508 = vpack.c.b16 %v423, %v422
    %v509 = vpack.c.b16 %v425, %v424
    %v510 = vpack.c.b16 %v427, %v426
    %v511 = vpack.c.b16 %v429, %v428
    %v512 = vpack.c.b16 %v431, %v430
    %v513 = vpack.c.b16 %v433, %v432
    %v514 = vpack.c.b16 %v435, %v434
    %v515 = vpack.c.b16 %v437, %v436
    %v516 = vpack.c.b16 %v439, %v438
    %v517 = vpack.c.b16 %v441, %v440
    %v518 = vpack.c.b16 %v443, %v442
    %v519 = vpack.c.b16 %v445, %v444
    %v520 = vpack.c.b16 %v447, %v446
    %v521 = vpack.c.b16 %v449, %v448
    %v522 = vpack.c.b16 %v451, %v450
    %v523 = vpack.c.b16 %v453, %v452
    %v524 = vpack.c.b16 %v455, %v454
    %v525 = vpack.c.b16 %v457, %v456
    %v526 = vpack.c.b16 %v459, %v458
    %v527 = vpack.c.b16 %v461, %v460
    %v528 = vpack.c.b16 %v463, %v462
    %v529 = vpack.c.b16 %v465, %v464
    %594 = vmatprep.subr.bf16.mxu0 0
    %595 = vmatpush1.bf16.msra.mxu0 %v473
    %596 = vmatprep.subr.bf16.mxu0 0
    %597 = vmatpush1.bf16.msra.mxu0 %v472
    %598 = vmatprep.subr.bf16.mxu0 0
    %599 = vmatpush1.bf16.msra.mxu0 %v471
    %600 = vmatprep.subr.bf16.mxu0 0
    %601 = vmatpush1.bf16.msra.mxu0 %v470
    %602 = vmatprep.subr.bf16.mxu0 0
    %603 = vmatpush1.bf16.msra.mxu0 %v469
    %604 = vmatprep.subr.bf16.mxu0 0
    %605 = vmatpush1.bf16.msra.mxu0 %v468
    %606 = vmatprep.subr.bf16.mxu0 0
    %607 = vmatpush1.bf16.msra.mxu0 %v467
    %608 = vmatprep.subr.bf16.mxu0 0
    %609 = vmatpush1.bf16.msra.mxu0 %v466
    %610 = vmatprep.subr.bf16.mxu0 0
    %611 = vmatpush2.bf16.msra.mxu0 %v481
    %612 = vmatprep.subr.bf16.mxu0 0
    %613 = vmatpush2.bf16.msra.mxu0 %v480
    %614 = vmatprep.subr.bf16.mxu0 0
    %615 = vmatpush2.bf16.msra.mxu0 %v479
    %616 = vmatprep.subr.bf16.mxu0 0
    %617 = vmatpush2.bf16.msra.mxu0 %v478
    %618 = vmatprep.subr.bf16.mxu0 0
    %619 = vmatpush2.bf16.msra.mxu0 %v477
    %620 = vmatprep.subr.bf16.mxu0 0
    %621 = vmatpush2.bf16.msra.mxu0 %v476
    %622 = vmatprep.subr.bf16.mxu0 0
    %623 = vmatpush2.bf16.msra.mxu0 %v475
    %624 = vmatprep.subr.bf16.mxu0 0
    %625 = vmatpush2.bf16.msra.mxu0 %v474
    %626 = vmatprep.mubr.bf16.mxu0 %v190
    %627 = vmatmul.mubr.bf16.gmra.mxu0 %v176
    %v628 = vpop.f32.mrf.mxu0
    %v629 = vadd.f32 %v150, %v628
    %v630 = vpop.f32.mrf.mxu0
    %v631 = vpop.f32.mrf.mxu0
    %v632 = vpop.f32.mrf.mxu0
    %633 = vdwg.mxu0
    %634 = vmatprep.subr.bf16.mxu0 0
    %635 = vmatpush1.bf16.msra.mxu0 %v489
    %636 = vmatprep.subr.bf16.mxu0 0
    %637 = vmatpush1.bf16.msra.mxu0 %v488
    %638 = vmatprep.subr.bf16.mxu0 0
    %639 = vmatpush1.bf16.msra.mxu0 %v487
    %640 = vmatprep.subr.bf16.mxu0 0
    %641 = vmatpush1.bf16.msra.mxu0 %v486
    %642 = vmatprep.subr.bf16.mxu0 0
    %643 = vmatpush1.bf16.msra.mxu0 %v485
    %644 = vmatprep.subr.bf16.mxu0 0
    %645 = vmatpush1.bf16.msra.mxu0 %v484
    %646 = vmatprep.subr.bf16.mxu0 0
    %647 = vmatpush1.bf16.msra.mxu0 %v483
    %648 = vmatprep.subr.bf16.mxu0 0
    %649 = vmatpush1.bf16.msra.mxu0 %v482
    %650 = vmatprep.subr.bf16.mxu0 0
    %651 = vmatpush2.bf16.msra.mxu0 %v497
    %652 = vmatprep.subr.bf16.mxu0 0
    %653 = vmatpush2.bf16.msra.mxu0 %v496
    %654 = vmatprep.subr.bf16.mxu0 0
    %655 = vmatpush2.bf16.msra.mxu0 %v495
    %656 = vmatprep.subr.bf16.mxu0 0
    %657 = vmatpush2.bf16.msra.mxu0 %v494
    %658 = vmatprep.subr.bf16.mxu0 0
    %659 = vmatpush2.bf16.msra.mxu0 %v493
    %660 = vmatprep.subr.bf16.mxu0 0
    %661 = vmatpush2.bf16.msra.mxu0 %v492
    %662 = vmatprep.subr.bf16.mxu0 0
    %663 = vmatpush2.bf16.msra.mxu0 %v491
    %664 = vmatprep.subr.bf16.mxu0 0
    %665 = vmatpush2.bf16.msra.mxu0 %v490
    %666 = vmatprep.mubr.bf16.mxu0 %v200
    %667 = vmatmul.mubr.bf16.gmra.mxu0 %v198
    %v668 = vpop.f32.mrf.mxu0
    %v669 = vadd.f32 %v629, %v668
    %v670 = vpop.f32.mrf.mxu0
    %v671 = vpop.f32.mrf.mxu0
    %v672 = vpop.f32.mrf.mxu0
    %673 = vdwg.mxu0
    %674 = vmatprep.subr.bf16.mxu0 0
    %675 = vmatpush1.bf16.msra.mxu0 %v505
    %676 = vmatprep.subr.bf16.mxu0 0
    %677 = vmatpush1.bf16.msra.mxu0 %v504
    %678 = vmatprep.subr.bf16.mxu0 0
    %679 = vmatpush1.bf16.msra.mxu0 %v503
    %680 = vmatprep.subr.bf16.mxu0 0
    %681 = vmatpush1.bf16.msra.mxu0 %v502
    %682 = vmatprep.subr.bf16.mxu0 0
    %683 = vmatpush1.bf16.msra.mxu0 %v501
    %684 = vmatprep.subr.bf16.mxu0 0
    %685 = vmatpush1.bf16.msra.mxu0 %v500
    %686 = vmatprep.subr.bf16.mxu0 0
    %687 = vmatpush1.bf16.msra.mxu0 %v499
    %688 = vmatprep.subr.bf16.mxu0 0
    %689 = vmatpush1.bf16.msra.mxu0 %v498
    %690 = vmatprep.subr.bf16.mxu0 0
    %691 = vmatpush2.bf16.msra.mxu0 %v513
    %692 = vmatprep.subr.bf16.mxu0 0
    %693 = vmatpush2.bf16.msra.mxu0 %v512
    %694 = vmatprep.subr.bf16.mxu0 0
    %695 = vmatpush2.bf16.msra.mxu0 %v511
    %696 = vmatprep.subr.bf16.mxu0 0
    %697 = vmatpush2.bf16.msra.mxu0 %v510
    %698 = vmatprep.subr.bf16.mxu0 0
    %699 = vmatpush2.bf16.msra.mxu0 %v509
    %700 = vmatprep.subr.bf16.mxu0 0
    %701 = vmatpush2.bf16.msra.mxu0 %v508
    %702 = vmatprep.subr.bf16.mxu0 0
    %703 = vmatpush2.bf16.msra.mxu0 %v507
    %704 = vmatprep.subr.bf16.mxu0 0
    %705 = vmatpush2.bf16.msra.mxu0 %v506
    %706 = vmatprep.mubr.bf16.mxu0 %v197
    %707 = vmatmul.mubr.bf16.gmra.mxu0 %v183
    %v708 = vpop.f32.mrf.mxu0
    %v709 = vadd.f32 %v669, %v708
    %v710 = vpop.f32.mrf.mxu0
    %v711 = vpop.f32.mrf.mxu0
    %v712 = vpop.f32.mrf.mxu0
    %713 = vdwg.mxu0
    %714 = vmatprep.subr.bf16.mxu0 0
    %715 = vmatpush1.bf16.msra.mxu0 %v521
    %716 = vmatprep.subr.bf16.mxu0 0
    %717 = vmatpush1.bf16.msra.mxu0 %v520
    %718 = vmatprep.subr.bf16.mxu0 0
    %719 = vmatpush1.bf16.msra.mxu0 %v519
    %720 = vmatprep.subr.bf16.mxu0 0
    %721 = vmatpush1.bf16.msra.mxu0 %v518
    %722 = vmatprep.subr.bf16.mxu0 0
    %723 = vmatpush1.bf16.msra.mxu0 %v517
    %724 = vmatprep.subr.bf16.mxu0 0
    %725 = vmatpush1.bf16.msra.mxu0 %v516
    %726 = vmatprep.subr.bf16.mxu0 0
    %727 = vmatpush1.bf16.msra.mxu0 %v515
    %728 = vmatprep.subr.bf16.mxu0 0
    %729 = vmatpush1.bf16.msra.mxu0 %v514
    %730 = vmatprep.subr.bf16.mxu0 0
    %731 = vmatpush2.bf16.msra.mxu0 %v529
    %732 = vmatprep.subr.bf16.mxu0 0
    %733 = vmatpush2.bf16.msra.mxu0 %v528
    %734 = vmatprep.subr.bf16.mxu0 0
    %735 = vmatpush2.bf16.msra.mxu0 %v527
    %736 = vmatprep.subr.bf16.mxu0 0
    %737 = vmatpush2.bf16.msra.mxu0 %v526
    %738 = vmatprep.subr.bf16.mxu0 0
    %739 = vmatpush2.bf16.msra.mxu0 %v525
    %740 = vmatprep.subr.bf16.mxu0 0
    %741 = vmatpush2.bf16.msra.mxu0 %v524
    %742 = vmatprep.subr.bf16.mxu0 0
    %743 = vmatpush2.bf16.msra.mxu0 %v523
    %744 = vmatprep.subr.bf16.mxu0 0
    %745 = vmatpush2.bf16.msra.mxu0 %v522
    %746 = vmatprep.mubr.bf16.mxu0 %v201
    %747 = vmatmul.mubr.bf16.gmra.mxu0 %v199
    %v748 = vpop.f32.mrf.mxu0
    %v749 = vadd.f32 %v709, %v748
    %v750 = vpop.f32.mrf.mxu0
    %v751 = vpop.f32.mrf.mxu0
    %v752 = vpop.f32.mrf.mxu0
    %753 = vdwg.mxu0
    %vm754 = vcmask 74752
    %v755 = vsel %vm754, %v749, -inf
    %756 = vmax.xlane.f32.xlu0 %v755
    %v757 = vpop.xlane.xlu0 %756
    %v758 = vsub.f32 %v749, %v757
    %v759 = vmul.f32 %v758, 1.442695
    %v760 = vpow.pop %v759
    %v761 = vsel %vm754, %v760, 0.0
    %762 = vadd.xlane.f32.xlu0 %v761
    %v763 = vpop.xlane.xlu0 %762
    %v764 = vlog2.pop %v763
    %v765 = vmul.f32 %v764, 0.6931472
    %v766 = vsub.f32 %v758, %v765
    %767 = vst.msk [vmem:[#allocation2] sm:$0x3] %vm754, %v766
    // Predicated region
    $region14: #{forward.5} parent=1 // pred_check
      _
    $region15: #{forward.5} parent=1 // pred_check_branch
      %769 = sbr.rel (0) target = $region17
    $region16: #{forward.5} parent=1 // pred_region
      %s771 = ssub.s32 32, 32
      %772 = vsyncadd [#allocation3], %s771
      %s774 = sshll.u32 [#allocation2], 4
      %s775 = int_to_ptr.vmem [resolvable:$true] %s774
      %777 = dma.vmem_to_hbm [thread:$0]  %s775, 32, %s3, [#allocation3]
    $region17: #{forward.5} parent=1 // pred_fallthru
      _
    // Predicated region
    $region18: #{forward.5} parent=1 // pred_check
      _
    $region19: #{forward.5} parent=1 // pred_check_branch
      %779 = sbr.rel (0) target = $region21
    $region20: #{forward.5} parent=1 // pred_region
      %780 = dma.done [#allocation3], 32
    $region21: #{forward.5} parent=1 // pred_fallthru
      _
    %781 = vsyncpa [#allocation3], 1

</llo_original>
